<compile_context>
chip_gen: v5e
topology: v5e:2x2
jax: 0.10.0
libtpu: 0.0.40
codegen_flags: <defaults>
</compile_context>

<pallas_src>
import jax
import jax.numpy as jnp
from jax.experimental import pallas as pl
from jax.experimental.pallas import tpu as pltpu

BN_EPS = 1e-5
GIN_EPS = 0.0  # GINEConv default eps


def _batchnorm_f32(h, gamma, beta):
    """Training-mode BatchNorm1d (biased variance), single-pass stats, f32."""
    n = h.shape[0]
    inv_n = 1.0 / n
    s = jnp.sum(h, axis=0, keepdims=True)
    ss = jnp.sum(h * h, axis=0, keepdims=True)
    m = s * inv_n
    v = ss * inv_n - m * m
    return (h - m) * jax.lax.rsqrt(v + BN_EPS) * gamma + beta


def gnn_block_kernel(src_ref,                      # (E,1) i32  VMEM (resident)
                     dst_ref,                      # (1,E) i32  VMEM (resident)
                     x0_ref,                       # (N,D) f32  initial node features
                     ea_ref,                       # (E,D) bf16 edge features
                     w1_ref,                       # (D,2D) bf16 layer-l
                     w2_ref,                       # (2D,D) bf16 layer-l
                     vec_ref,                      # (8,2D) f32  packed b1/g1/bb1/b2/g2/bb2
                     out_ref,                      # (N,D) f32  layer-l output block
                     x_scr,                        # (N,D) f32  carried node features
                     gat_scr,                      # (E,N) bf16 gather one-hot (built once)
                     scat_scr,                     # (N,E) bf16 scatter one-hot (built once)
                     msg_scr):                     # (E,D) bf16 relu(x[src]+edge_attr)
    l = pl.program_id(0)
    num_layers = pl.num_programs(0)
    n, d = x_scr.shape
    e = msg_scr.shape[0]

    # ---- one-time init (layer 0): load x, build both one-hots in bf16 ----
    @pl.when(l == 0)
    def _init():
        x_scr[...] = x0_ref[...]
        col_ids = jax.lax.broadcasted_iota(jnp.int32, (e, n), 1)   # node id per column
        gat_scr[...] = (col_ids == src_ref[...]).astype(jnp.bfloat16)   # exact 0/1
        row_ids = jax.lax.broadcasted_iota(jnp.int32, (n, e), 0)   # node id per row
        scat_scr[...] = (row_ids == dst_ref[...]).astype(jnp.bfloat16)  # exact 0/1

    x = x_scr[...]                                  # (N, D) f32
    x_b = x.astype(jnp.bfloat16)

    # ---- gather x[src] via one-hot MXU matmul; fuse +edge_attr and relu ----
    xg = jnp.dot(gat_scr[...], x_b,
                 preferred_element_type=jnp.float32)               # (E, D) == x[src]
    msg_scr[...] = jnp.maximum(xg + ea_ref[...].astype(jnp.float32),
                               0.0).astype(jnp.bfloat16)

    # ---- scatter-add: bf16 MXU matmul with f32 accumulation ----
    agg = jnp.dot(scat_scr[...], msg_scr[...],
                  preferred_element_type=jnp.float32)              # (N, D)
    h = (1.0 + GIN_EPS) * x + agg

    # ---- packed per-layer vectors ----
    b1 = vec_ref[0:1, :]
    g1 = vec_ref[1:2, :]
    bb1 = vec_ref[2:3, :]
    b2 = vec_ref[3:4, :d]
    g2 = vec_ref[4:5, :d]
    bb2 = vec_ref[5:6, :d]

    # ---- GINE nn: Linear(D,2D) -> BatchNorm1d(2D) -> ReLU -> Linear(2D,D) ----
    h1 = jnp.dot(h.astype(jnp.bfloat16), w1_ref[...],
                 preferred_element_type=jnp.float32) + b1          # (N, 2D)
    h1 = jnp.maximum(_batchnorm_f32(h1, g1, bb1), 0.0)
    h2 = jnp.dot(h1.astype(jnp.bfloat16), w2_ref[...],
                 preferred_element_type=jnp.float32) + b2          # (N, D)

    # ---- outer BatchNorm1d(D); relu on all but the last layer ----
    o = _batchnorm_f32(h2, g2, bb2)

    @pl.when(l < num_layers - 1)
    def _not_last():
        r = jnp.maximum(o, 0.0)
        out_ref[...] = r
        x_scr[...] = r

    @pl.when(l == num_layers - 1)
    def _last():
        out_ref[...] = o
        x_scr[...] = o


def gnn_block_forward(batch, x, edge_index, edge_attr, params):
    """Pallas implementation of GNNBlock.forward. Returns (x, xs)."""
    del batch  # unused by the reference forward
    n, d = x.shape
    e = edge_attr.shape[0]
    d2 = 2 * d
    num_layers = len(params)

    src = edge_index[0].astype(jnp.int32).reshape(e, 1)   # per-edge row ids
    dst = edge_index[1].astype(jnp.int32).reshape(1, e)   # per-edge lane ids
    ea_bf16 = edge_attr.astype(jnp.bfloat16)              # halve resident/DMA bytes

    # Stack per-layer matmul weights (bf16 MXU operands) along a layer axis.
    w1 = jnp.stack([p[0] for p in params]).astype(jnp.bfloat16)   # (L, D, 2D)
    w2 = jnp.stack([p[4] for p in params]).astype(jnp.bfloat16)   # (L, 2D, D)

    # Pack the six small per-layer vectors into one (L, 8, 2D) f32 array
    # (rows: b1, g1, bb1, b2|pad, g2|pad, bb2|pad, 0, 0) -> single DMA / layer.
    def _pack(p):
        _, b1, g1, bb1, _, b2, g2, bb2 = p
        rows = jnp.zeros((8, d2), jnp.float32)
        rows = rows.at[0, :].set(b1.reshape(-1))
        rows = rows.at[1, :].set(g1.reshape(-1))
        rows = rows.at[2, :].set(bb1.reshape(-1))
        rows = rows.at[3, :d].set(b2.reshape(-1))
        rows = rows.at[4, :d].set(g2.reshape(-1))
        rows = rows.at[5, :d].set(bb2.reshape(-1))
        return rows
    vecs = jnp.stack([_pack(p) for p in params])                  # (L, 8, 2D)

    grid_spec = pltpu.PrefetchScalarGridSpec(
        num_scalar_prefetch=0,
        grid=(num_layers,),
        in_specs=[
            pl.BlockSpec((e, 1), lambda l: (0, 0)),               # src (resident)
            pl.BlockSpec((1, e), lambda l: (0, 0)),               # dst (resident)
            pl.BlockSpec((n, d), lambda l: (0, 0)),               # x0 (resident)
            pl.BlockSpec((e, d), lambda l: (0, 0)),               # edge_attr bf16 (resident)
            pl.BlockSpec((None, d, d2), lambda l: (l, 0, 0)),     # W1  (streamed)
            pl.BlockSpec((None, d2, d), lambda l: (l, 0, 0)),     # W2  (streamed)
            pl.BlockSpec((None, 8, d2), lambda l: (l, 0, 0)),     # packed vectors
        ],
        out_specs=pl.BlockSpec((None, n, d), lambda l: (l, 0, 0)),
        scratch_shapes=[
            pltpu.VMEM((n, d), jnp.float32),     # carried node features
            pltpu.VMEM((e, n), jnp.bfloat16),    # gather one-hot (built once)
            pltpu.VMEM((n, e), jnp.bfloat16),    # scatter one-hot (built once)
            pltpu.VMEM((e, d), jnp.bfloat16),    # relu(x[src] + edge_attr)
        ],
    )

    out_stack = pl.pallas_call(
        gnn_block_kernel,
        out_shape=jax.ShapeDtypeStruct((num_layers, n, d), jnp.float32),
        grid_spec=grid_spec,
        compiler_params=pltpu.CompilerParams(
            dimension_semantics=("arbitrary",),   # layers carry state -> sequential
            vmem_limit_bytes=32 << 20),           # explicit: portable v5e/v6e/v7x
    )(src, dst, x, ea_bf16, w1, w2, vecs)

    xs = [out_stack[i] for i in range(num_layers)]
    return xs[-1], xs


def init_gnn_params(key, emb_dim, num_gc_layers):
    """Deterministic parameter init (xavier-uniform linears, BN gamma=1, beta=0)."""
    params = []
    for _ in range(num_gc_layers):
        key, k1, k2 = jax.random.split(key, 3)
        lim1 = (6.0 / (emb_dim + 2 * emb_dim)) ** 0.5
        w1 = jax.random.uniform(k1, (emb_dim, 2 * emb_dim), jnp.float32, -lim1, lim1)
        b1 = jnp.zeros((1, 2 * emb_dim), jnp.float32)
        g1 = jnp.ones((1, 2 * emb_dim), jnp.float32)
        bb1 = jnp.zeros((1, 2 * emb_dim), jnp.float32)
        lim2 = (6.0 / (2 * emb_dim + emb_dim)) ** 0.5
        w2 = jax.random.uniform(k2, (2 * emb_dim, emb_dim), jnp.float32, -lim2, lim2)
        b2 = jnp.zeros((1, emb_dim), jnp.float32)
        g2 = jnp.ones((1, emb_dim), jnp.float32)
        bb2 = jnp.zeros((1, emb_dim), jnp.float32)
        params.append((w1, b1, g1, bb1, w2, b2, g2, bb2))
    return params


def gnn_block_forward_ref(batch, x, edge_index, edge_attr, params, mxu_bf16=True):
    """Pure-JAX reference.  mxu_bf16=True mirrors the kernel's bf16-MXU-operand
    policy (f32 accumulation); mxu_bf16=False is the exact-f32 PyTorch math."""
    del batch
    src, dst = edge_index[0], edge_index[1]
    num_layers = len(params)

    if mxu_bf16:
        rnd = lambda a: a.astype(jnp.bfloat16).astype(jnp.float32)
    else:
        rnd = lambda a: a

    def mm(a, b):
        if mxu_bf16:
            return jnp.dot(a.astype(jnp.bfloat16), b.astype(jnp.bfloat16),
                           preferred_element_type=jnp.float32)
        return jnp.dot(a, b)

    ea = rnd(edge_attr)
    xs = []
    for i in range(num_layers):
        w1, b1, g1, bb1, w2, b2, g2, bb2 = params[i]
        msg = jnp.maximum(rnd(x)[src] + ea, 0.0)
        msg = rnd(msg)
        agg = jnp.zeros_like(x).at[dst].add(msg)
        h = (1.0 + GIN_EPS) * x + agg
        h1 = mm(h, w1) + b1
        m1 = h1.mean(0, keepdims=True)
        v1 = ((h1 - m1) ** 2).mean(0, keepdims=True)
        h1 = jnp.maximum((h1 - m1) * jax.lax.rsqrt(v1 + BN_EPS) * g1 + bb1, 0.0)
        h2 = mm(h1, w2) + b2
        m2 = h2.mean(0, keepdims=True)
        v2 = ((h2 - m2) ** 2).mean(0, keepdims=True)
        o = (h2 - m2) * jax.lax.rsqrt(v2 + BN_EPS) * g2 + bb2
        if i != num_layers - 1:
            o = jnp.maximum(o, 0.0)
        x = o
        xs.append(x)
    return x, xs


if __name__ == "__main__":
    emb_dim = 128        # lane-dense feature dim (multiple of 128)
    num_gc_layers = 3
    num_nodes = 64
    num_edges = 256

    key = jax.random.PRNGKey(0)
    kx, ke, ki, kp = jax.random.split(key, 4)

    x = jax.random.normal(kx, (num_nodes, emb_dim), jnp.float32)
    edge_attr = jax.random.normal(ke, (num_edges, emb_dim), jnp.float32)
    edge_index = jax.random.randint(ki, (2, num_edges), 0, num_nodes, jnp.int32)
    batch = jnp.zeros((num_nodes,), jnp.int32)  # unused by forward

    params = init_gnn_params(kp, emb_dim, num_gc_layers)

    out, xs = gnn_block_forward(batch, x, edge_index, edge_attr, params)
    out = jax.block_until_ready(out)
    xs = [jax.block_until_ready(t) for t in xs]

    # Reference matching the kernel's bf16 MXU-operand policy (tight check).
    out_ref, xs_ref = gnn_block_forward_ref(batch, x, edge_index, edge_attr,
                                            params, mxu_bf16=True)
    # Exact f32 PyTorch-semantics reference (loose check: bf16 rounding only).
    out_f32, _ = gnn_block_forward_ref(batch, x, edge_index, edge_attr,
                                       params, mxu_bf16=False)

    assert out.shape == (num_nodes, emb_dim) and len(xs) == num_gc_layers
    assert jnp.allclose(out, out_ref, atol=2.5e-2, rtol=2.5e-2)
    for a, b in zip(xs, xs_ref):
        assert jnp.allclose(a, b, atol=2.5e-2, rtol=2.5e-2)
    assert float(jnp.max(jnp.abs(out - out_f32))) < 0.25

    print("KERNEL_OK")
</pallas_src>

<mosaic_0001>
module attributes {stable_mosaic.version = 11 : i64} {
  func.func @gnn_block_kernel(%arg0: i32, %arg1: memref<256x1xi32, #tpu.memory_space<vmem>>, %arg2: memref<1x256xi32, #tpu.memory_space<vmem>>, %arg3: memref<64x128xf32, #tpu.memory_space<vmem>>, %arg4: memref<256x128xbf16, #tpu.memory_space<vmem>>, %arg5: memref<1x128x256xbf16, #tpu.memory_space<vmem>>, %arg6: memref<1x256x128xbf16, #tpu.memory_space<vmem>>, %arg7: memref<1x8x256xf32, #tpu.memory_space<vmem>>, %arg8: memref<1x64x128xf32, #tpu.memory_space<vmem>>, %arg9: memref<64x128xf32, #tpu.memory_space<vmem>>, %arg10: memref<256x64xbf16, #tpu.memory_space<vmem>>, %arg11: memref<64x256xbf16, #tpu.memory_space<vmem>>, %arg12: memref<256x128xbf16, #tpu.memory_space<vmem>>) attributes {dimension_semantics = [#tpu.dimension_semantics<arbitrary>], iteration_bounds = array<i64: 3>, scalar_prefetch = 0 : i64, scratch_operands = 4 : i64, tpu.core_type = #tpu.core_type<tc>, window_params = [{pipeline_mode = #tpu.pipeline_mode<synchronous>, transform_indices = @transform_0, window_bounds = array<i64: 256, 1>}, {pipeline_mode = #tpu.pipeline_mode<synchronous>, transform_indices = @transform_1, window_bounds = array<i64: 1, 256>}, {pipeline_mode = #tpu.pipeline_mode<synchronous>, transform_indices = @transform_2, window_bounds = array<i64: 64, 128>}, {pipeline_mode = #tpu.pipeline_mode<synchronous>, transform_indices = @transform_3, window_bounds = array<i64: 256, 128>}, {transform_indices = @transform_4, window_bounds = array<i64: 1, 128, 256>}, {transform_indices = @transform_5, window_bounds = array<i64: 1, 256, 128>}, {transform_indices = @transform_6, window_bounds = array<i64: 1, 8, 256>}, {transform_indices = @transform_7, window_bounds = array<i64: 1, 64, 128>}]} {
    %c0_i32 = arith.constant 0 : i32
    %0 = arith.cmpi eq, %arg0, %c0_i32 : i32
    %1 = arith.extui %0 : i1 to i32
    %c0_i32_0 = arith.constant 0 : i32
    %2 = arith.cmpi ne, %1, %c0_i32_0 : i32
    scf.if %2 {
      %c0_50 = arith.constant 0 : index
      %c0_51 = arith.constant 0 : index
      %96 = vector.load %arg3[%c0_50, %c0_51] : memref<64x128xf32, #tpu.memory_space<vmem>>, vector<64x128xf32>
      %c0_52 = arith.constant 0 : index
      %c0_53 = arith.constant 0 : index
      %97 = vector.load %arg9[%c0_52, %c0_53] : memref<64x128xf32, #tpu.memory_space<vmem>>, vector<64x128xf32>
      tpu.vector_store %arg9[%c0_52, %c0_53], %96 {strides = array<i32>} : memref<64x128xf32, #tpu.memory_space<vmem>>, vector<64x128xf32>,
      %98 = tpu.iota {dimensions = array<i32: 1>} : vector<256x64xi32>
      %c0_54 = arith.constant 0 : index
      %c0_55 = arith.constant 0 : index
      %99 = vector.load %arg1[%c0_54, %c0_55] : memref<256x1xi32, #tpu.memory_space<vmem>>, vector<256x1xi32>
      %100 = vector.broadcast %99 : vector<256x1xi32> to vector<256x64xi32>
      %101 = arith.cmpi eq, %98, %100 : vector<256x64xi32>
      %102 = arith.extui %101 : vector<256x64xi1> to vector<256x64xi32>
      %103 = arith.sitofp %102 : vector<256x64xi32> to vector<256x64xf32>
      %104 = arith.truncf %103 : vector<256x64xf32> to vector<256x64xbf16>
      %c0_56 = arith.constant 0 : index
      %c0_57 = arith.constant 0 : index
      %105 = vector.load %arg10[%c0_56, %c0_57] : memref<256x64xbf16, #tpu.memory_space<vmem>>, vector<256x64xbf16>
      tpu.vector_store %arg10[%c0_56, %c0_57], %104 {strides = array<i32>} : memref<256x64xbf16, #tpu.memory_space<vmem>>, vector<256x64xbf16>,
      %106 = tpu.iota {dimensions = array<i32: 0>} : vector<64x256xi32>
      %c0_58 = arith.constant 0 : index
      %c0_59 = arith.constant 0 : index
      %107 = vector.load %arg2[%c0_58, %c0_59] : memref<1x256xi32, #tpu.memory_space<vmem>>, vector<1x256xi32>
      %108 = vector.broadcast %107 : vector<1x256xi32> to vector<64x256xi32>
      %109 = arith.cmpi eq, %106, %108 : vector<64x256xi32>
      %110 = arith.extui %109 : vector<64x256xi1> to vector<64x256xi32>
      %111 = arith.sitofp %110 : vector<64x256xi32> to vector<64x256xf32>
      %112 = arith.truncf %111 : vector<64x256xf32> to vector<64x256xbf16>
      %c0_60 = arith.constant 0 : index
      %c0_61 = arith.constant 0 : index
      %113 = vector.load %arg11[%c0_60, %c0_61] : memref<64x256xbf16, #tpu.memory_space<vmem>>, vector<64x256xbf16>
      tpu.vector_store %arg11[%c0_60, %c0_61], %112 {strides = array<i32>} : memref<64x256xbf16, #tpu.memory_space<vmem>>, vector<64x256xbf16>,
    } else {
    }
    %c0 = arith.constant 0 : index
    %c0_1 = arith.constant 0 : index
    %3 = vector.load %arg9[%c0, %c0_1] : memref<64x128xf32, #tpu.memory_space<vmem>>, vector<64x128xf32>
    %4 = arith.truncf %3 : vector<64x128xf32> to vector<64x128xbf16>
    %c0_2 = arith.constant 0 : index
    %c0_3 = arith.constant 0 : index
    %5 = vector.load %arg10[%c0_2, %c0_3] : memref<256x64xbf16, #tpu.memory_space<vmem>>, vector<256x64xbf16>
    %cst = arith.constant dense<0.000000e+00> : vector<256x128xf32>
    %6 = tpu.matmul %5, %4, %cst {dimension_numbers = #tpu.dot_dimension_numbers<[1], [0], [0], [1], [0, 0, 1, 1], [], []>} : vector<256x64xbf16>, vector<64x128xbf16>, vector<256x128xf32> -> vector<256x128xf32>
    %c0_4 = arith.constant 0 : index
    %c0_5 = arith.constant 0 : index
    %7 = vector.load %arg4[%c0_4, %c0_5] : memref<256x128xbf16, #tpu.memory_space<vmem>>, vector<256x128xbf16>
    %8 = arith.extf %7 : vector<256x128xbf16> to vector<256x128xf32>
    %9 = arith.addf %6, %8 : vector<256x128xf32>
    %cst_6 = arith.constant 0.000000e+00 : f32
    %10 = vector.broadcast %cst_6 : f32 to vector<256x128xf32>
    %11 = arith.maximumf %9, %10 : vector<256x128xf32>
    %12 = arith.truncf %11 : vector<256x128xf32> to vector<256x128xbf16>
    %c0_7 = arith.constant 0 : index
    %c0_8 = arith.constant 0 : index
    %13 = vector.load %arg12[%c0_7, %c0_8] : memref<256x128xbf16, #tpu.memory_space<vmem>>, vector<256x128xbf16>
    tpu.vector_store %arg12[%c0_7, %c0_8], %12 {strides = array<i32>} : memref<256x128xbf16, #tpu.memory_space<vmem>>, vector<256x128xbf16>,
    %c0_9 = arith.constant 0 : index
    %c0_10 = arith.constant 0 : index
    %14 = vector.load %arg11[%c0_9, %c0_10] : memref<64x256xbf16, #tpu.memory_space<vmem>>, vector<64x256xbf16>
    %c0_11 = arith.constant 0 : index
    %c0_12 = arith.constant 0 : index
    %15 = vector.load %arg12[%c0_11, %c0_12] : memref<256x128xbf16, #tpu.memory_space<vmem>>, vector<256x128xbf16>
    %cst_13 = arith.constant dense<0.000000e+00> : vector<64x128xf32>
    %16 = tpu.matmul %14, %15, %cst_13 {dimension_numbers = #tpu.dot_dimension_numbers<[1], [0], [0], [1], [0, 0, 1, 1], [], []>} : vector<64x256xbf16>, vector<256x128xbf16>, vector<64x128xf32> -> vector<64x128xf32>
    %cst_14 = arith.constant 1.000000e+00 : f32
    %17 = vector.broadcast %cst_14 : f32 to vector<64x128xf32>
    %18 = arith.mulf %17, %3 : vector<64x128xf32>
    %19 = arith.addf %18, %16 : vector<64x128xf32>
    %c0_15 = arith.constant 0 : index
    %c0_16 = arith.constant 0 : index
    %c0_17 = arith.constant 0 : index
    %20 = vector.load %arg7[%c0_15, %c0_16, %c0_17] : memref<1x8x256xf32, #tpu.memory_space<vmem>>, vector<1x1x256xf32>
    %21 = vector.shape_cast %20 : vector<1x1x256xf32> to vector<1x256xf32>
    %c0_18 = arith.constant 0 : index
    %c1 = arith.constant 1 : index
    %c0_19 = arith.constant 0 : index
    %22 = vector.load %arg7[%c0_18, %c1, %c0_19] : memref<1x8x256xf32, #tpu.memory_space<vmem>>, vector<1x1x256xf32>
    %23 = vector.shape_cast %22 : vector<1x1x256xf32> to vector<1x256xf32>
    %c0_20 = arith.constant 0 : index
    %c2 = arith.constant 2 : index
    %c0_21 = arith.constant 0 : index
    %24 = vector.load %arg7[%c0_20, %c2, %c0_21] : memref<1x8x256xf32, #tpu.memory_space<vmem>>, vector<1x1x256xf32>
    %25 = vector.shape_cast %24 : vector<1x1x256xf32> to vector<1x256xf32>
    %c0_22 = arith.constant 0 : index
    %c3 = arith.constant 3 : index
    %c0_23 = arith.constant 0 : index
    %26 = vector.load %arg7[%c0_22, %c3, %c0_23] : memref<1x8x256xf32, #tpu.memory_space<vmem>>, vector<1x1x128xf32>
    %27 = vector.shape_cast %26 : vector<1x1x128xf32> to vector<1x128xf32>
    %c0_24 = arith.constant 0 : index
    %c4 = arith.constant 4 : index
    %c0_25 = arith.constant 0 : index
    %28 = vector.load %arg7[%c0_24, %c4, %c0_25] : memref<1x8x256xf32, #tpu.memory_space<vmem>>, vector<1x1x128xf32>
    %29 = vector.shape_cast %28 : vector<1x1x128xf32> to vector<1x128xf32>
    %c0_26 = arith.constant 0 : index
    %c5 = arith.constant 5 : index
    %c0_27 = arith.constant 0 : index
    %30 = vector.load %arg7[%c0_26, %c5, %c0_27] : memref<1x8x256xf32, #tpu.memory_space<vmem>>, vector<1x1x128xf32>
    %31 = vector.shape_cast %30 : vector<1x1x128xf32> to vector<1x128xf32>
    %32 = arith.truncf %19 : vector<64x128xf32> to vector<64x128xbf16>
    %c0_28 = arith.constant 0 : index
    %c0_29 = arith.constant 0 : index
    %c0_30 = arith.constant 0 : index
    %33 = vector.load %arg5[%c0_28, %c0_29, %c0_30] : memref<1x128x256xbf16, #tpu.memory_space<vmem>>, vector<1x128x256xbf16>
    %34 = vector.shape_cast %33 : vector<1x128x256xbf16> to vector<128x256xbf16>
    %cst_31 = arith.constant dense<0.000000e+00> : vector<64x256xf32>
    %35 = tpu.matmul %32, %34, %cst_31 {dimension_numbers = #tpu.dot_dimension_numbers<[1], [0], [0], [1], [0, 0, 1, 1], [], []>} : vector<64x128xbf16>, vector<128x256xbf16>, vector<64x256xf32> -> vector<64x256xf32>
    %36 = vector.broadcast %21 : vector<1x256xf32> to vector<64x256xf32>
    %37 = arith.addf %35, %36 : vector<64x256xf32>
    %cst_32 = arith.constant dense<0.000000e+00> : vector<256xf32>
    %38 = vector.multi_reduction <add>, %37, %cst_32 [0] : vector<64x256xf32> to vector<256xf32>
    %39 = vector.shape_cast %38 : vector<256xf32> to vector<1x256xf32>
    %40 = arith.mulf %37, %37 : vector<64x256xf32>
    %cst_33 = arith.constant dense<0.000000e+00> : vector<256xf32>
    %41 = vector.multi_reduction <add>, %40, %cst_33 [0] : vector<64x256xf32> to vector<256xf32>
    %42 = vector.shape_cast %41 : vector<256xf32> to vector<1x256xf32>
    %cst_34 = arith.constant 1.562500e-02 : f32
    %43 = vector.broadcast %cst_34 : f32 to vector<1x256xf32>
    %44 = arith.mulf %39, %43 : vector<1x256xf32>
    %cst_35 = arith.constant 1.562500e-02 : f32
    %45 = vector.broadcast %cst_35 : f32 to vector<1x256xf32>
    %46 = arith.mulf %42, %45 : vector<1x256xf32>
    %47 = arith.mulf %44, %44 : vector<1x256xf32>
    %48 = arith.subf %46, %47 : vector<1x256xf32>
    %49 = vector.broadcast %44 : vector<1x256xf32> to vector<64x256xf32>
    %50 = arith.subf %37, %49 : vector<64x256xf32>
    %cst_36 = arith.constant 9.99999974E-6 : f32
    %51 = vector.broadcast %cst_36 : f32 to vector<1x256xf32>
    %52 = arith.addf %48, %51 : vector<1x256xf32>
    %53 = math.rsqrt %52 : vector<1x256xf32>
    %54 = vector.broadcast %53 : vector<1x256xf32> to vector<64x256xf32>
    %55 = arith.mulf %50, %54 : vector<64x256xf32>
    %56 = vector.broadcast %23 : vector<1x256xf32> to vector<64x256xf32>
    %57 = arith.mulf %55, %56 : vector<64x256xf32>
    %58 = vector.broadcast %25 : vector<1x256xf32> to vector<64x256xf32>
    %59 = arith.addf %57, %58 : vector<64x256xf32>
    %cst_37 = arith.constant 0.000000e+00 : f32
    %60 = vector.broadcast %cst_37 : f32 to vector<64x256xf32>
    %61 = arith.maximumf %59, %60 : vector<64x256xf32>
    %62 = arith.truncf %61 : vector<64x256xf32> to vector<64x256xbf16>
    %c0_38 = arith.constant 0 : index
    %c0_39 = arith.constant 0 : index
    %c0_40 = arith.constant 0 : index
    %63 = vector.load %arg6[%c0_38, %c0_39, %c0_40] : memref<1x256x128xbf16, #tpu.memory_space<vmem>>, vector<1x256x128xbf16>
    %64 = vector.shape_cast %63 : vector<1x256x128xbf16> to vector<256x128xbf16>
    %cst_41 = arith.constant dense<0.000000e+00> : vector<64x128xf32>
    %65 = tpu.matmul %62, %64, %cst_41 {dimension_numbers = #tpu.dot_dimension_numbers<[1], [0], [0], [1], [0, 0, 1, 1], [], []>} : vector<64x256xbf16>, vector<256x128xbf16>, vector<64x128xf32> -> vector<64x128xf32>
    %66 = vector.broadcast %27 : vector<1x128xf32> to vector<64x128xf32>
    %67 = arith.addf %65, %66 : vector<64x128xf32>
    %cst_42 = arith.constant dense<0.000000e+00> : vector<128xf32>
    %68 = vector.multi_reduction <add>, %67, %cst_42 [0] : vector<64x128xf32> to vector<128xf32>
    %69 = vector.shape_cast %68 : vector<128xf32> to vector<1x128xf32>
    %70 = arith.mulf %67, %67 : vector<64x128xf32>
    %cst_43 = arith.constant dense<0.000000e+00> : vector<128xf32>
    %71 = vector.multi_reduction <add>, %70, %cst_43 [0] : vector<64x128xf32> to vector<128xf32>
    %72 = vector.shape_cast %71 : vector<128xf32> to vector<1x128xf32>
    %cst_44 = arith.constant 1.562500e-02 : f32
    %73 = vector.broadcast %cst_44 : f32 to vector<1x128xf32>
    %74 = arith.mulf %69, %73 : vector<1x128xf32>
    %cst_45 = arith.constant 1.562500e-02 : f32
    %75 = vector.broadcast %cst_45 : f32 to vector<1x128xf32>
    %76 = arith.mulf %72, %75 : vector<1x128xf32>
    %77 = arith.mulf %74, %74 : vector<1x128xf32>
    %78 = arith.subf %76, %77 : vector<1x128xf32>
    %79 = vector.broadcast %74 : vector<1x128xf32> to vector<64x128xf32>
    %80 = arith.subf %67, %79 : vector<64x128xf32>
    %cst_46 = arith.constant 9.99999974E-6 : f32
    %81 = vector.broadcast %cst_46 : f32 to vector<1x128xf32>
    %82 = arith.addf %78, %81 : vector<1x128xf32>
    %83 = math.rsqrt %82 : vector<1x128xf32>
    %84 = vector.broadcast %83 : vector<1x128xf32> to vector<64x128xf32>
    %85 = arith.mulf %80, %84 : vector<64x128xf32>
    %86 = vector.broadcast %29 : vector<1x128xf32> to vector<64x128xf32>
    %87 = arith.mulf %85, %86 : vector<64x128xf32>
    %88 = vector.broadcast %31 : vector<1x128xf32> to vector<64x128xf32>
    %89 = arith.addf %87, %88 : vector<64x128xf32>
    %c2_i32 = arith.constant 2 : i32
    %90 = arith.cmpi slt, %arg0, %c2_i32 : i32
    %91 = arith.extui %90 : i1 to i32
    %c0_i32_47 = arith.constant 0 : i32
    %92 = arith.cmpi ne, %91, %c0_i32_47 : i32
    scf.if %92 {
      %cst_50 = arith.constant 0.000000e+00 : f32
      %96 = vector.broadcast %cst_50 : f32 to vector<64x128xf32>
      %97 = arith.maximumf %89, %96 : vector<64x128xf32>
      %c0_51 = arith.constant 0 : index
      %c0_52 = arith.constant 0 : index
      %c0_53 = arith.constant 0 : index
      %98 = vector.load %arg8[%c0_51, %c0_52, %c0_53] : memref<1x64x128xf32, #tpu.memory_space<vmem>>, vector<1x64x128xf32>
      %99 = vector.shape_cast %98 : vector<1x64x128xf32> to vector<64x128xf32>
      %100 = vector.shape_cast %97 : vector<64x128xf32> to vector<1x64x128xf32>
      tpu.vector_store %arg8[%c0_51, %c0_52, %c0_53], %100 {strides = array<i32>} : memref<1x64x128xf32, #tpu.memory_space<vmem>>, vector<1x64x128xf32>,
      %c0_54 = arith.constant 0 : index
      %c0_55 = arith.constant 0 : index
      %101 = vector.load %arg9[%c0_54, %c0_55] : memref<64x128xf32, #tpu.memory_space<vmem>>, vector<64x128xf32>
      tpu.vector_store %arg9[%c0_54, %c0_55], %97 {strides = array<i32>} : memref<64x128xf32, #tpu.memory_space<vmem>>, vector<64x128xf32>,
    } else {
    }
    %c2_i32_48 = arith.constant 2 : i32
    %93 = arith.cmpi eq, %arg0, %c2_i32_48 : i32
    %94 = arith.extui %93 : i1 to i32
    %c0_i32_49 = arith.constant 0 : i32
    %95 = arith.cmpi ne, %94, %c0_i32_49 : i32
    scf.if %95 {
      %c0_50 = arith.constant 0 : index
      %c0_51 = arith.constant 0 : index
      %c0_52 = arith.constant 0 : index
      %96 = vector.load %arg8[%c0_50, %c0_51, %c0_52] : memref<1x64x128xf32, #tpu.memory_space<vmem>>, vector<1x64x128xf32>
      %97 = vector.shape_cast %96 : vector<1x64x128xf32> to vector<64x128xf32>
      %98 = vector.shape_cast %89 : vector<64x128xf32> to vector<1x64x128xf32>
      tpu.vector_store %arg8[%c0_50, %c0_51, %c0_52], %98 {strides = array<i32>} : memref<1x64x128xf32, #tpu.memory_space<vmem>>, vector<1x64x128xf32>,
      %c0_53 = arith.constant 0 : index
      %c0_54 = arith.constant 0 : index
      %99 = vector.load %arg9[%c0_53, %c0_54] : memref<64x128xf32, #tpu.memory_space<vmem>>, vector<64x128xf32>
      tpu.vector_store %arg9[%c0_53, %c0_54], %89 {strides = array<i32>} : memref<64x128xf32, #tpu.memory_space<vmem>>, vector<64x128xf32>,
    } else {
    }
    return
  }
  func.func @transform_0(%arg0: i32) -> (i32, i32) {
    %c0_i32 = arith.constant 0 : i32
    %c0_i32_0 = arith.constant 0 : i32
    %c0_i32_1 = arith.constant 0 : i32
    return %c0_i32, %c0_i32_0 : i32, i32
  }
  func.func @transform_1(%arg0: i32) -> (i32, i32) {
    %c0_i32 = arith.constant 0 : i32
    %c0_i32_0 = arith.constant 0 : i32
    %c0_i32_1 = arith.constant 0 : i32
    return %c0_i32, %c0_i32_0 : i32, i32
  }
  func.func @transform_2(%arg0: i32) -> (i32, i32) {
    %c0_i32 = arith.constant 0 : i32
    %c0_i32_0 = arith.constant 0 : i32
    %c0_i32_1 = arith.constant 0 : i32
    return %c0_i32, %c0_i32_0 : i32, i32
  }
  func.func @transform_3(%arg0: i32) -> (i32, i32) {
    %c0_i32 = arith.constant 0 : i32
    %c0_i32_0 = arith.constant 0 : i32
    %c0_i32_1 = arith.constant 0 : i32
    return %c0_i32, %c0_i32_0 : i32, i32
  }
  func.func @transform_4(%arg0: i32) -> (i32, i32, i32) {
    %c0_i32 = arith.constant 0 : i32
    %c0_i32_0 = arith.constant 0 : i32
    %c0_i32_1 = arith.constant 0 : i32
    return %arg0, %c0_i32, %c0_i32_0 : i32, i32, i32
  }
  func.func @transform_5(%arg0: i32) -> (i32, i32, i32) {
    %c0_i32 = arith.constant 0 : i32
    %c0_i32_0 = arith.constant 0 : i32
    %c0_i32_1 = arith.constant 0 : i32
    return %arg0, %c0_i32, %c0_i32_0 : i32, i32, i32
  }
  func.func @transform_6(%arg0: i32) -> (i32, i32, i32) {
    %c0_i32 = arith.constant 0 : i32
    %c0_i32_0 = arith.constant 0 : i32
    %c0_i32_1 = arith.constant 0 : i32
    return %arg0, %c0_i32, %c0_i32_0 : i32, i32, i32
  }
  func.func @transform_7(%arg0: i32) -> (i32, i32, i32) {
    %c0_i32 = arith.constant 0 : i32
    %c0_i32_0 = arith.constant 0 : i32
    %c0_i32_1 = arith.constant 0 : i32
    return %arg0, %c0_i32, %c0_i32_0 : i32, i32, i32
  }
}

</mosaic_0001>

<llo_original>
// kernel: tpu_custom_call.1
$region0: #{tpu_custom_call.1}
  #allocation0 [shape = 'u32[]', space=smem, size = 0x4, offset = 0x4, fixed_abs, tag = 'smem constant byte address 0x4 - core index']
  #allocation1 [shape = 'u32[72,128]{1,0:T(1,128)}', space=vmem, size = 0x9000, scoped, tag = 'internal scratch']
  #allocation2 [shape = 'f32[64,128]{1,0:T(8,128)}', space=vmem, size = 0x8000, scoped, tag = 'scratch operand']
  #allocation3 [shape = 'bf16[256,64]{1,0:T(8,128)(2,1)}', space=vmem, size = 0x10000, scoped, tag = 'scratch operand']
  #allocation4 [shape = 'bf16[64,256]{1,0:T(8,128)(2,1)}', space=vmem, size = 0x8000, scoped, tag = 'scratch operand']
  #allocation5 [shape = 'bf16[256,128]{1,0:T(8,128)(2,1)}', space=vmem, size = 0x10000, scoped, tag = 'scratch operand']
  %s0 = inlined_call_operand.vmem [shape: s32[256,1], index: 0, kind: input, shape index: {}]
  %s1 = inlined_call_operand.vmem [shape: s32[1,256], index: 1, kind: input, shape index: {}]
  %s2 = inlined_call_operand.vmem [shape: f32[64,128], index: 2, kind: input, shape index: {}]
  %s3 = inlined_call_operand.vmem [shape: bf16[256,128], index: 3, kind: input, shape index: {}]
  %s4 = inlined_call_operand.hbm [shape: bf16[3,128,256], index: 4, kind: input, shape index: {}]
  %s5 = inlined_call_operand.hbm [shape: bf16[3,256,128], index: 5, kind: input, shape index: {}]
  %s6 = inlined_call_operand.vmem [shape: f32[3,8,256], index: 6, kind: input, shape index: {}]
  %s7 = inlined_call_operand.hbm [shape: f32[3,64,128], index: 7, kind: output, shape index: {}]
  %s8 = sld [smem:[#allocation0]]
  $region81: #{tpu_custom_call.1} parent=0
    _
  %s10 = ssub.s32 1, %s8
  %s11 = scalar_select 0, %s10, %s8
  $region1: #{tpu_custom_call.1} parent=0
    #allocation6 [shape = 'u8[131072]{0}', space=vmem, size = 0x20000, scoped, tag = 'input window, operand 4']
    #allocation7 [shape = 's32[2]{0}', space=sflag, size = 0x8, scoped, tag = 'scoped memory for tpu_custom_call.1']
    #allocation8 [shape = 's32[2]{0}', space=sflag, size = 0x8, scoped, tag = 'scoped memory for tpu_custom_call.1']
    #allocation9 [shape = 'u8[131072]{0}', space=vmem, size = 0x20000, scoped, tag = 'input window, operand 5']
    #allocation10 [shape = 's32[2]{0}', space=sflag, size = 0x8, scoped, tag = 'scoped memory for tpu_custom_call.1']
    #allocation11 [shape = 'u8[65536]{0}', space=vmem, size = 0x10000, scoped, tag = 'output window, operand 0']
    %12 = vsyncpa [#allocation7], 0
    %s13 = scalar_lea.sflag [#allocation7], 1
    %14 = vsyncpa %s13, 0
    %15 = vsyncpa [#allocation10], 0
    %s16 = scalar_lea.sflag [#allocation10], 1
    %17 = vsyncpa %s16, 0
    %18 = vsyncpa [#allocation8], 0
    %s19 = scalar_lea.sflag [#allocation8], 1
    %20 = vsyncpa %s19, 0
    loop: start=0, step=1, limit=5
    $region2: #{tpu_custom_call.1} parent=1 // loop_pre_header
      _
    $region3: #{tpu_custom_call.1} parent=1 // loop_header
      %s22 = sphi 0, %s26
      %p23 = scmp.ge.s32.totalorder %s22, 5
      %s30 = sphi 0, %s30
      %s32 = sphi 0, %s30
      %s33 = sphi 0, %s32
      %s47 = sphi 0, %s33
      %s51 = sphi 0, %s51
      %s53 = sphi 0, %s51
      %s54 = sphi 0, %s53
      %s68 = sphi 0, %s54
      %s72 = sphi 0, %s72
      %s74 = sphi 0, %s72
      %s75 = sphi 0, %s74
      %s89 = sphi 0, %s75
      %s93 = sphi 0, %s93
      %s95 = sphi 0, %s93
      %s96 = sphi 0, %s95
      %s110 = sphi 0, %s96
      %s116 = sphi 0, %s118
      %s119 = sphi 0, %s116
      %s120 = sphi 0, %s119
      %s136 = sphi 0, %s120
      %s142 = sphi 0, %s144
      %s145 = sphi 0, %s142
      %s146 = sphi 0, %s145
      %s162 = sphi 0, %s146
      %s168 = sphi 0, %s170
      %s171 = sphi 0, %s168
      %s172 = sphi 0, %s171
      %s188 = sphi 0, %s172
      %s194 = sphi 0, %s196
      %s197 = sphi 0, %s194
      %s198 = sphi 0, %s197
      %s214 = sphi 0, %s198
    $region4: #{tpu_custom_call.1} parent=1 // loop_header_branch
      %25 = sbr.rel (%p23) target = $region8
    $region5: #{tpu_custom_call.1} parent=1 // loop_body
      %s27 = ssub.s32 %s22, 1
      %s28 = ssub.s32 %s22, 2
      %s29 = sadd.s32 %s22, 1
      %s31 = sadd.s32 %s30, 1
      %p34 = scmp.eq.s32.totalorder %s22, 2
      %p35 = scmp.ne.s32.totalorder %s30, %s32
      %p36 = scmp.eq.s32.totalorder %s22, 0
      %p37 = por %p35, %p36
      %p38 = scmp.ne.s32.totalorder %s30, %s32
      %p39 = scmp.eq.s32.totalorder %s27, 2
      %p40 = por %p38, %p39
      %p41 = scmp.ne.s32.totalorder %s32, %s33
      %p42 = scmp.eq.s32.totalorder %s27, 0
      %p43 = por %p41, %p42
      %p44 = scmp.ne.s32.totalorder %s32, %s33
      %p45 = scmp.eq.s32.totalorder %s28, 2
      %p46 = por %p44, %p45
      %p48 = scmp.ne.s32.totalorder %s33, %s47
      %p49 = scmp.eq.s32.totalorder %s28, 0
      %p50 = por %p48, %p49
      %s52 = sadd.s32 %s51, 1
      %p55 = scmp.eq.s32.totalorder %s22, 2
      %p56 = scmp.ne.s32.totalorder %s51, %s53
      %p57 = scmp.eq.s32.totalorder %s22, 0
      %p58 = por %p56, %p57
      %p59 = scmp.ne.s32.totalorder %s51, %s53
      %p60 = scmp.eq.s32.totalorder %s27, 2
      %p61 = por %p59, %p60
      %p62 = scmp.ne.s32.totalorder %s53, %s54
      %p63 = scmp.eq.s32.totalorder %s27, 0
      %p64 = por %p62, %p63
      %p65 = scmp.ne.s32.totalorder %s53, %s54
      %p66 = scmp.eq.s32.totalorder %s28, 2
      %p67 = por %p65, %p66
      %p69 = scmp.ne.s32.totalorder %s54, %s68
      %p70 = scmp.eq.s32.totalorder %s28, 0
      %p71 = por %p69, %p70
      %s73 = sadd.s32 %s72, 1
      %p76 = scmp.eq.s32.totalorder %s22, 2
      %p77 = scmp.ne.s32.totalorder %s72, %s74
      %p78 = scmp.eq.s32.totalorder %s22, 0
      %p79 = por %p77, %p78
      %p80 = scmp.ne.s32.totalorder %s72, %s74
      %p81 = scmp.eq.s32.totalorder %s27, 2
      %p82 = por %p80, %p81
      %p83 = scmp.ne.s32.totalorder %s74, %s75
      %p84 = scmp.eq.s32.totalorder %s27, 0
      %p85 = por %p83, %p84
      %p86 = scmp.ne.s32.totalorder %s74, %s75
      %p87 = scmp.eq.s32.totalorder %s28, 2
      %p88 = por %p86, %p87
      %p90 = scmp.ne.s32.totalorder %s75, %s89
      %p91 = scmp.eq.s32.totalorder %s28, 0
      %p92 = por %p90, %p91
      %s94 = sadd.s32 %s93, 1
      %p97 = scmp.eq.s32.totalorder %s22, 2
      %p98 = scmp.ne.s32.totalorder %s93, %s95
      %p99 = scmp.eq.s32.totalorder %s22, 0
      %p100 = por %p98, %p99
      %p101 = scmp.ne.s32.totalorder %s93, %s95
      %p102 = scmp.eq.s32.totalorder %s27, 2
      %p103 = por %p101, %p102
      %p104 = scmp.ne.s32.totalorder %s95, %s96
      %p105 = scmp.eq.s32.totalorder %s27, 0
      %p106 = por %p104, %p105
      %p107 = scmp.ne.s32.totalorder %s95, %s96
      %p108 = scmp.eq.s32.totalorder %s28, 2
      %p109 = por %p107, %p108
      %p111 = scmp.ne.s32.totalorder %s96, %s110
      %p112 = scmp.eq.s32.totalorder %s28, 0
      %p113 = por %p111, %p112
      %s114 = ssub.s32 %s22, %s29
      %p115 = scmp.eq.s32.totalorder %s114, 0
      %s117 = sadd.s32 %s116, 1
      %s118 = scalar_select %p115, %s116, %s117
      %p121 = pneg %p115
      %p122 = scmp.eq.s32.totalorder %s22, 2
      %p123 = por %p121, %p122
      %p124 = scmp.ne.s32.totalorder %s116, %s119
      %p125 = scmp.eq.s32.totalorder %s22, 0
      %p126 = por %p124, %p125
      %p127 = scmp.ne.s32.totalorder %s116, %s119
      %p128 = scmp.eq.s32.totalorder %s27, 2
      %p129 = por %p127, %p128
      %p130 = scmp.ne.s32.totalorder %s119, %s120
      %p131 = scmp.eq.s32.totalorder %s27, 0
      %p132 = por %p130, %p131
      %p133 = scmp.ne.s32.totalorder %s119, %s120
      %p134 = scmp.eq.s32.totalorder %s28, 2
      %p135 = por %p133, %p134
      %p137 = scmp.ne.s32.totalorder %s120, %s136
      %p138 = scmp.eq.s32.totalorder %s28, 0
      %p139 = por %p137, %p138
      %s140 = ssub.s32 %s22, %s29
      %p141 = scmp.eq.s32.totalorder %s140, 0
      %s143 = sadd.s32 %s142, 1
      %s144 = scalar_select %p141, %s142, %s143
      %p147 = pneg %p141
      %p148 = scmp.eq.s32.totalorder %s22, 2
      %p149 = por %p147, %p148
      %p150 = scmp.ne.s32.totalorder %s142, %s145
      %p151 = scmp.eq.s32.totalorder %s22, 0
      %p152 = por %p150, %p151
      %p153 = scmp.ne.s32.totalorder %s142, %s145
      %p154 = scmp.eq.s32.totalorder %s27, 2
      %p155 = por %p153, %p154
      %p156 = scmp.ne.s32.totalorder %s145, %s146
      %p157 = scmp.eq.s32.totalorder %s27, 0
      %p158 = por %p156, %p157
      %p159 = scmp.ne.s32.totalorder %s145, %s146
      %p160 = scmp.eq.s32.totalorder %s28, 2
      %p161 = por %p159, %p160
      %p163 = scmp.ne.s32.totalorder %s146, %s162
      %p164 = scmp.eq.s32.totalorder %s28, 0
      %p165 = por %p163, %p164
      %s166 = ssub.s32 %s22, %s29
      %p167 = scmp.eq.s32.totalorder %s166, 0
      %s169 = sadd.s32 %s168, 1
      %s170 = scalar_select %p167, %s168, %s169
      %p173 = pneg %p167
      %p174 = scmp.eq.s32.totalorder %s22, 2
      %p175 = por %p173, %p174
      %p176 = scmp.ne.s32.totalorder %s168, %s171
      %p177 = scmp.eq.s32.totalorder %s22, 0
      %p178 = por %p176, %p177
      %p179 = scmp.ne.s32.totalorder %s168, %s171
      %p180 = scmp.eq.s32.totalorder %s27, 2
      %p181 = por %p179, %p180
      %p182 = scmp.ne.s32.totalorder %s171, %s172
      %p183 = scmp.eq.s32.totalorder %s27, 0
      %p184 = por %p182, %p183
      %p185 = scmp.ne.s32.totalorder %s171, %s172
      %p186 = scmp.eq.s32.totalorder %s28, 2
      %p187 = por %p185, %p186
      %p189 = scmp.ne.s32.totalorder %s172, %s188
      %p190 = scmp.eq.s32.totalorder %s28, 0
      %p191 = por %p189, %p190
      %s192 = ssub.s32 %s22, %s29
      %p193 = scmp.eq.s32.totalorder %s192, 0
      %s195 = sadd.s32 %s194, 1
      %s196 = scalar_select %p193, %s194, %s195
      %p199 = pneg %p193
      %p200 = scmp.eq.s32.totalorder %s22, 2
      %p201 = por %p199, %p200
      %p202 = scmp.ne.s32.totalorder %s194, %s197
      %p203 = scmp.eq.s32.totalorder %s22, 0
      %p204 = por %p202, %p203
      %p205 = scmp.ne.s32.totalorder %s194, %s197
      %p206 = scmp.eq.s32.totalorder %s27, 2
      %p207 = por %p205, %p206
      %p208 = scmp.ne.s32.totalorder %s197, %s198
      %p209 = scmp.eq.s32.totalorder %s27, 0
      %p210 = por %p208, %p209
      %p211 = scmp.ne.s32.totalorder %s197, %s198
      %p212 = scmp.eq.s32.totalorder %s28, 2
      %p213 = por %p211, %p212
      %p215 = scmp.ne.s32.totalorder %s198, %s214
      %p216 = scmp.eq.s32.totalorder %s28, 0
      %p217 = por %p215, %p216
      %p218 = scmp.le.s32.totalorder 1, %s22
      %p219 = scmp.lt.s32.totalorder %s22, 4
      %p220 = pnand %p218, %p219
      %p221 = pneg %p220
      // Predicated region
      $region9: #{tpu_custom_call.1} parent=5 // pred_check
        _
      $region10: #{tpu_custom_call.1} parent=5 // pred_check_branch
        %223 = sbr.rel (%p220) target = $region12
      $region11: #{tpu_custom_call.1} parent=5 // pred_region
        %s224 = ssub.s32 %s22, 1
        // Predicated region
        $region13: #{tpu_custom_call.1} parent=11 // pred_check
          %p225 = pneg %p43
        $region14: #{tpu_custom_call.1} parent=11 // pred_check_branch
          %227 = sbr.rel (%p225) target = $region16
        $region15: #{tpu_custom_call.1} parent=11 // pred_region
          _
        $region16: #{tpu_custom_call.1} parent=11 // pred_fallthru
          _
        // Predicated region
        $region17: #{tpu_custom_call.1} parent=11 // pred_check
          %p228 = pneg %p64
        $region18: #{tpu_custom_call.1} parent=11 // pred_check_branch
          %230 = sbr.rel (%p228) target = $region20
        $region19: #{tpu_custom_call.1} parent=11 // pred_region
          _
        $region20: #{tpu_custom_call.1} parent=11 // pred_fallthru
          _
        // Predicated region
        $region21: #{tpu_custom_call.1} parent=11 // pred_check
          %p231 = pneg %p85
        $region22: #{tpu_custom_call.1} parent=11 // pred_check_branch
          %233 = sbr.rel (%p231) target = $region24
        $region23: #{tpu_custom_call.1} parent=11 // pred_region
          _
        $region24: #{tpu_custom_call.1} parent=11 // pred_fallthru
          _
        // Predicated region
        $region25: #{tpu_custom_call.1} parent=11 // pred_check
          %p234 = pneg %p106
        $region26: #{tpu_custom_call.1} parent=11 // pred_check_branch
          %236 = sbr.rel (%p234) target = $region28
        $region27: #{tpu_custom_call.1} parent=11 // pred_region
          _
        $region28: #{tpu_custom_call.1} parent=11 // pred_fallthru
          _
      $region12: #{tpu_custom_call.1} parent=5 // pred_fallthru
        _
      %p237 = scmp.lt.s32.totalorder %s22, 3
      // Predicated region
      $region29: #{tpu_custom_call.1} parent=5 // pred_check
        %p238 = pneg %p237
      $region30: #{tpu_custom_call.1} parent=5 // pred_check_branch
        %240 = sbr.rel (%p238) target = $region32
      $region31: #{tpu_custom_call.1} parent=5 // pred_region
        // Predicated region
        $region33: #{tpu_custom_call.1} parent=31 // pred_check
          %p241 = pneg %p126
        $region34: #{tpu_custom_call.1} parent=31 // pred_check_branch
          %243 = sbr.rel (%p241) target = $region36
        $region35: #{tpu_custom_call.1} parent=31 // pred_region
          %s244 = sand.u32 %s116, 1
          %s245 = scalar_lea.sflag [#allocation7], %s244
          %s246 = sand.u32 %s116, 1
          %s247 = smul.addr %s246, 128
          %s248 = scalar_lea.vmem [#allocation6], %s247
          %250 = vsyncadd %s245, 0
          %s251 = smul.addr %s22, 32
          %s252 = smul.addr %s251, 4
          %s253 = scalar_lea.hbm %s4, %s252
          %s254 = sshll.u32 %s253, 4
          %s255 = int_to_ptr.hbm [resolvable:$true] %s254
          %s256 = sshll.u32 %s248, 4
          %s257 = int_to_ptr.vmem [resolvable:$true] %s256
          %262 = dma.hbm_to_vmem [thread:$0]  %s255, 2048, %s257, %s245, 128, 128, 8
        $region36: #{tpu_custom_call.1} parent=31 // pred_fallthru
          _
        // Predicated region
        $region37: #{tpu_custom_call.1} parent=31 // pred_check
          %p263 = pneg %p152
        $region38: #{tpu_custom_call.1} parent=31 // pred_check_branch
          %265 = sbr.rel (%p263) target = $region40
        $region39: #{tpu_custom_call.1} parent=31 // pred_region
          %s266 = sand.u32 %s142, 1
          %s267 = scalar_lea.sflag [#allocation10], %s266
          %s268 = sand.u32 %s142, 1
          %s269 = smul.addr %s268, 128
          %s270 = scalar_lea.vmem [#allocation9], %s269
          %272 = vsyncadd %s267, 0
          %s273 = smul.addr %s22, 32
          %s274 = smul.addr %s273, 4
          %s275 = scalar_lea.hbm %s5, %s274
          %s276 = sshll.u32 %s275, 4
          %s277 = int_to_ptr.hbm [resolvable:$true] %s276
          %s278 = sshll.u32 %s270, 4
          %s279 = int_to_ptr.vmem [resolvable:$true] %s278
          %284 = dma.hbm_to_vmem [thread:$0]  %s277, 2048, %s279, %s267, 64, 64, 4
        $region40: #{tpu_custom_call.1} parent=31 // pred_fallthru
          _
        // Predicated region
        $region41: #{tpu_custom_call.1} parent=31 // pred_check
          %p285 = pneg %p178
        $region42: #{tpu_custom_call.1} parent=31 // pred_check_branch
          %287 = sbr.rel (%p285) target = $region44
        $region43: #{tpu_custom_call.1} parent=31 // pred_region
          %p288 = scmp.lt.s32.totalorder %s22, 2
          %s289 = scalar_select %p288, %s22, 2
          %s290 = smul.addr %s289, 2
          %s291 = smul.addr %s290, 8
          %s292 = scalar_lea.vmem %s6, %s291
        $region44: #{tpu_custom_call.1} parent=31 // pred_fallthru
          _
      $region32: #{tpu_custom_call.1} parent=5 // pred_fallthru
        _
      %p293 = scmp.le.s32.totalorder 1, %s22
      %p294 = scmp.lt.s32.totalorder %s22, 4
      %p295 = pnand %p293, %p294
      %p296 = pneg %p295
      // Predicated region
      $region45: #{tpu_custom_call.1} parent=5 // pred_check
        _
      $region46: #{tpu_custom_call.1} parent=5 // pred_check_branch
        %298 = sbr.rel (%p295) target = $region48
      $region47: #{tpu_custom_call.1} parent=5 // pred_region
        %s299 = ssub.s32 %s22, 1
        %s300 = sand.u32 %s119, 1
        %s301 = scalar_lea.sflag [#allocation7], %s300
        %s302 = sand.u32 %s119, 1
        %s303 = smul.addr %s302, 128
        %s304 = scalar_lea.vmem [#allocation6], %s303
        // Predicated region
        $region49: #{tpu_custom_call.1} parent=47 // pred_check
          %p305 = pneg %p132
        $region50: #{tpu_custom_call.1} parent=47 // pred_check_branch
          %307 = sbr.rel (%p305) target = $region52
        $region51: #{tpu_custom_call.1} parent=47 // pred_region
          %309 = dma.done %s301, 2048
        $region52: #{tpu_custom_call.1} parent=47 // pred_fallthru
          _
        %s310 = sand.u32 %s145, 1
        %s311 = scalar_lea.sflag [#allocation10], %s310
        %s312 = sand.u32 %s145, 1
        %s313 = smul.addr %s312, 128
        %s314 = scalar_lea.vmem [#allocation9], %s313
        // Predicated region
        $region53: #{tpu_custom_call.1} parent=47 // pred_check
          %p315 = pneg %p158
        $region54: #{tpu_custom_call.1} parent=47 // pred_check_branch
          %317 = sbr.rel (%p315) target = $region56
        $region55: #{tpu_custom_call.1} parent=47 // pred_region
          %319 = dma.done %s311, 2048
        $region56: #{tpu_custom_call.1} parent=47 // pred_fallthru
          _
        %p320 = pneg %p43
        %p321 = pneg %p40
        %p322 = pneg %p64
        %p323 = pneg %p61
        %p324 = pneg %p85
        %p325 = pneg %p82
        %p326 = pneg %p106
        %p327 = pneg %p103
        %s328 = sand.u32 %s119, 1
        %s329 = scalar_lea.sflag [#allocation7], %s328
        %s330 = sand.u32 %s119, 1
        %s331 = smul.addr %s330, 128
        %s332 = scalar_lea.vmem [#allocation6], %s331
        %p333 = pneg %p132
        %p334 = pneg %p129
        %s335 = sand.u32 %s145, 1
        %s336 = scalar_lea.sflag [#allocation10], %s335
        %s337 = sand.u32 %s145, 1
        %s338 = smul.addr %s337, 128
        %s339 = scalar_lea.vmem [#allocation9], %s338
        %p340 = pneg %p158
        %p341 = pneg %p155
        %p342 = scmp.lt.s32.totalorder %s27, 2
        %s343 = scalar_select %p342, %s27, 2
        %s344 = smul.addr %s343, 2
        %s345 = smul.addr %s344, 8
        %s346 = scalar_lea.vmem %s6, %s345
        %p347 = pneg %p184
        %p348 = pneg %p181
        %p349 = pneg %p210
        %p350 = pneg %p207
        %s351 = sand.u32 %s197, 1
        %s352 = scalar_lea.sflag [#allocation8], %s351
        %s353 = sand.u32 %s197, 1
        %s354 = smul.addr %s353, 64
        %s355 = scalar_lea.vmem [#allocation11], %s354
        %p356 = scmp.lt.s32.totalorder %s27, 2
        %s357 = scalar_select %p356, %s27, 2
        %s358 = smul.addr %s357, 2
        %s359 = smul.addr %s358, 8
        %s360 = scalar_lea.vmem %s6, %s359
        %p362 = scmp.eq.s32.totalorder %s27, 0
        // Predicated region
        $region57: #{tpu_custom_call.1} parent=47 // pred_check
          %p363 = pneg %p362
        $region58: #{tpu_custom_call.1} parent=47 // pred_check_branch
          %365 = sbr.rel (%p363) target = $region60
        $region59: #{tpu_custom_call.1} parent=47 // pred_region
          %v366 = vld [vmem:[%s2] sm:$0xff]
          %v367 = vld [vmem:[%s2 + $0x8] sm:$0xff]
          %v368 = vld [vmem:[%s2 + $0x10] sm:$0xff]
          %v369 = vld [vmem:[%s2 + $0x18] sm:$0xff]
          %v370 = vld [vmem:[%s2 + $0x20] sm:$0xff]
          %v371 = vld [vmem:[%s2 + $0x28] sm:$0xff]
          %v372 = vld [vmem:[%s2 + $0x30] sm:$0xff]
          %v373 = vld [vmem:[%s2 + $0x38] sm:$0xff]
          %374 = vst [vmem:[#allocation2] sm:$0xff] %v366
          %375 = vst [vmem:[#allocation2 + $0x8] sm:$0xff] %v367
          %376 = vst [vmem:[#allocation2 + $0x10] sm:$0xff] %v368
          %377 = vst [vmem:[#allocation2 + $0x18] sm:$0xff] %v369
          %378 = vst [vmem:[#allocation2 + $0x20] sm:$0xff] %v370
          %379 = vst [vmem:[#allocation2 + $0x28] sm:$0xff] %v371
          %380 = vst [vmem:[#allocation2 + $0x30] sm:$0xff] %v372
          %381 = vst [vmem:[#allocation2 + $0x38] sm:$0xff] %v373
          %v382 = vlaneseq
          %v383 = vand.u32 %v382, 127
          %v384 = vld [vmem:[%s0] sm:$0xff]
          %v385 = vld [vmem:[%s0 + $0x8] sm:$0xff]
          %v386 = vld [vmem:[%s0 + $0x10] sm:$0xff]
          %v387 = vld [vmem:[%s0 + $0x18] sm:$0xff]
          %v388 = vld [vmem:[%s0 + $0x20] sm:$0xff]
          %v389 = vld [vmem:[%s0 + $0x28] sm:$0xff]
          %v390 = vld [vmem:[%s0 + $0x30] sm:$0xff]
          %v391 = vld [vmem:[%s0 + $0x38] sm:$0xff]
          %v392 = vld [vmem:[%s0 + $0x40] sm:$0xff]
          %v393 = vld [vmem:[%s0 + $0x48] sm:$0xff]
          %v394 = vld [vmem:[%s0 + $0x50] sm:$0xff]
          %v395 = vld [vmem:[%s0 + $0x58] sm:$0xff]
          %v396 = vld [vmem:[%s0 + $0x60] sm:$0xff]
          %v397 = vld [vmem:[%s0 + $0x68] sm:$0xff]
          %v398 = vld [vmem:[%s0 + $0x70] sm:$0xff]
          %v399 = vld [vmem:[%s0 + $0x78] sm:$0xff]
          %v400 = vld [vmem:[%s0 + $0x80] sm:$0xff]
          %v401 = vld [vmem:[%s0 + $0x88] sm:$0xff]
          %v402 = vld [vmem:[%s0 + $0x90] sm:$0xff]
          %v403 = vld [vmem:[%s0 + $0x98] sm:$0xff]
          %v404 = vld [vmem:[%s0 + $0xa0] sm:$0xff]
          %v405 = vld [vmem:[%s0 + $0xa8] sm:$0xff]
          %v406 = vld [vmem:[%s0 + $0xb0] sm:$0xff]
          %v407 = vld [vmem:[%s0 + $0xb8] sm:$0xff]
          %v408 = vld [vmem:[%s0 + $0xc0] sm:$0xff]
          %v409 = vld [vmem:[%s0 + $0xc8] sm:$0xff]
          %v410 = vld [vmem:[%s0 + $0xd0] sm:$0xff]
          %v411 = vld [vmem:[%s0 + $0xd8] sm:$0xff]
          %v412 = vld [vmem:[%s0 + $0xe0] sm:$0xff]
          %v413 = vld [vmem:[%s0 + $0xe8] sm:$0xff]
          %v414 = vld [vmem:[%s0 + $0xf0] sm:$0xff]
          %v415 = vld [vmem:[%s0 + $0xf8] sm:$0xff]
          %416 = vset.pattern.permute.xlu0 0
          %417 = vperm.xlu0 %416, %v384
          %v418 = vpop.permute.xlu0 %417
          %419 = vset.pattern.permute.xlu0 0
          %420 = vperm.xlu0 %419, %v385
          %v421 = vpop.permute.xlu0 %420
          %422 = vset.pattern.permute.xlu0 0
          %423 = vperm.xlu0 %422, %v386
          %v424 = vpop.permute.xlu0 %423
          %425 = vset.pattern.permute.xlu0 0
          %426 = vperm.xlu0 %425, %v387
          %v427 = vpop.permute.xlu0 %426
          %428 = vset.pattern.permute.xlu0 0
          %429 = vperm.xlu0 %428, %v388
          %v430 = vpop.permute.xlu0 %429
          %431 = vset.pattern.permute.xlu0 0
          %432 = vperm.xlu0 %431, %v389
          %v433 = vpop.permute.xlu0 %432
          %434 = vset.pattern.permute.xlu0 0
          %435 = vperm.xlu0 %434, %v390
          %v436 = vpop.permute.xlu0 %435
          %437 = vset.pattern.permute.xlu0 0
          %438 = vperm.xlu0 %437, %v391
          %v439 = vpop.permute.xlu0 %438
          %440 = vset.pattern.permute.xlu0 0
          %441 = vperm.xlu0 %440, %v392
          %v442 = vpop.permute.xlu0 %441
          %443 = vset.pattern.permute.xlu0 0
          %444 = vperm.xlu0 %443, %v393
          %v445 = vpop.permute.xlu0 %444
          %446 = vset.pattern.permute.xlu0 0
          %447 = vperm.xlu0 %446, %v394
          %v448 = vpop.permute.xlu0 %447
          %449 = vset.pattern.permute.xlu0 0
          %450 = vperm.xlu0 %449, %v395
          %v451 = vpop.permute.xlu0 %450
          %452 = vset.pattern.permute.xlu0 0
          %453 = vperm.xlu0 %452, %v396
          %v454 = vpop.permute.xlu0 %453
          %455 = vset.pattern.permute.xlu0 0
          %456 = vperm.xlu0 %455, %v397
          %v457 = vpop.permute.xlu0 %456
          %458 = vset.pattern.permute.xlu0 0
          %459 = vperm.xlu0 %458, %v398
          %v460 = vpop.permute.xlu0 %459
          %461 = vset.pattern.permute.xlu0 0
          %462 = vperm.xlu0 %461, %v399
          %v463 = vpop.permute.xlu0 %462
          %464 = vset.pattern.permute.xlu0 0
          %465 = vperm.xlu0 %464, %v400
          %v466 = vpop.permute.xlu0 %465
          %467 = vset.pattern.permute.xlu0 0
          %468 = vperm.xlu0 %467, %v401
          %v469 = vpop.permute.xlu0 %468
          %470 = vset.pattern.permute.xlu0 0
          %471 = vperm.xlu0 %470, %v402
          %v472 = vpop.permute.xlu0 %471
          %473 = vset.pattern.permute.xlu0 0
          %474 = vperm.xlu0 %473, %v403
          %v475 = vpop.permute.xlu0 %474
          %476 = vset.pattern.permute.xlu0 0
          %477 = vperm.xlu0 %476, %v404
          %v478 = vpop.permute.xlu0 %477
          %479 = vset.pattern.permute.xlu0 0
          %480 = vperm.xlu0 %479, %v405
          %v481 = vpop.permute.xlu0 %480
          %482 = vset.pattern.permute.xlu0 0
          %483 = vperm.xlu0 %482, %v406
          %v484 = vpop.permute.xlu0 %483
          %485 = vset.pattern.permute.xlu0 0
          %486 = vperm.xlu0 %485, %v407
          %v487 = vpop.permute.xlu0 %486
          %488 = vset.pattern.permute.xlu0 0
          %489 = vperm.xlu0 %488, %v408
          %v490 = vpop.permute.xlu0 %489
          %491 = vset.pattern.permute.xlu0 0
          %492 = vperm.xlu0 %491, %v409
          %v493 = vpop.permute.xlu0 %492
          %494 = vset.pattern.permute.xlu0 0
          %495 = vperm.xlu0 %494, %v410
          %v496 = vpop.permute.xlu0 %495
          %497 = vset.pattern.permute.xlu0 0
          %498 = vperm.xlu0 %497, %v411
          %v499 = vpop.permute.xlu0 %498
          %500 = vset.pattern.permute.xlu0 0
          %501 = vperm.xlu0 %500, %v412
          %v502 = vpop.permute.xlu0 %501
          %503 = vset.pattern.permute.xlu0 0
          %504 = vperm.xlu0 %503, %v413
          %v505 = vpop.permute.xlu0 %504
          %506 = vset.pattern.permute.xlu0 0
          %507 = vperm.xlu0 %506, %v414
          %v508 = vpop.permute.xlu0 %507
          %509 = vset.pattern.permute.xlu0 0
          %510 = vperm.xlu0 %509, %v415
          %v511 = vpop.permute.xlu0 %510
          %vm512 = vcmp.eq.s32.totalorder %v383, %v418
          %vm513 = vcmp.eq.s32.totalorder %v383, %v421
          %vm514 = vcmp.eq.s32.totalorder %v383, %v424
          %vm515 = vcmp.eq.s32.totalorder %v383, %v427
          %vm516 = vcmp.eq.s32.totalorder %v383, %v430
          %vm517 = vcmp.eq.s32.totalorder %v383, %v433
          %vm518 = vcmp.eq.s32.totalorder %v383, %v436
          %vm519 = vcmp.eq.s32.totalorder %v383, %v439
          %vm520 = vcmp.eq.s32.totalorder %v383, %v442
          %vm521 = vcmp.eq.s32.totalorder %v383, %v445
          %vm522 = vcmp.eq.s32.totalorder %v383, %v448
          %vm523 = vcmp.eq.s32.totalorder %v383, %v451
          %vm524 = vcmp.eq.s32.totalorder %v383, %v454
          %vm525 = vcmp.eq.s32.totalorder %v383, %v457
          %vm526 = vcmp.eq.s32.totalorder %v383, %v460
          %vm527 = vcmp.eq.s32.totalorder %v383, %v463
          %vm528 = vcmp.eq.s32.totalorder %v383, %v466
          %vm529 = vcmp.eq.s32.totalorder %v383, %v469
          %vm530 = vcmp.eq.s32.totalorder %v383, %v472
          %vm531 = vcmp.eq.s32.totalorder %v383, %v475
          %vm532 = vcmp.eq.s32.totalorder %v383, %v478
          %vm533 = vcmp.eq.s32.totalorder %v383, %v481
          %vm534 = vcmp.eq.s32.totalorder %v383, %v484
          %vm535 = vcmp.eq.s32.totalorder %v383, %v487
          %vm536 = vcmp.eq.s32.totalorder %v383, %v490
          %vm537 = vcmp.eq.s32.totalorder %v383, %v493
          %vm538 = vcmp.eq.s32.totalorder %v383, %v496
          %vm539 = vcmp.eq.s32.totalorder %v383, %v499
          %vm540 = vcmp.eq.s32.totalorder %v383, %v502
          %vm541 = vcmp.eq.s32.totalorder %v383, %v505
          %vm542 = vcmp.eq.s32.totalorder %v383, %v508
          %vm543 = vcmp.eq.s32.totalorder %v383, %v511
          %v544 = vsel %vm512, 1, 0
          %v545 = vsel %vm513, 1, 0
          %v546 = vsel %vm514, 1, 0
          %v547 = vsel %vm515, 1, 0
          %v548 = vsel %vm516, 1, 0
          %v549 = vsel %vm517, 1, 0
          %v550 = vsel %vm518, 1, 0
          %v551 = vsel %vm519, 1, 0
          %v552 = vsel %vm520, 1, 0
          %v553 = vsel %vm521, 1, 0
          %v554 = vsel %vm522, 1, 0
          %v555 = vsel %vm523, 1, 0
          %v556 = vsel %vm524, 1, 0
          %v557 = vsel %vm525, 1, 0
          %v558 = vsel %vm526, 1, 0
          %v559 = vsel %vm527, 1, 0
          %v560 = vsel %vm528, 1, 0
          %v561 = vsel %vm529, 1, 0
          %v562 = vsel %vm530, 1, 0
          %v563 = vsel %vm531, 1, 0
          %v564 = vsel %vm532, 1, 0
          %v565 = vsel %vm533, 1, 0
          %v566 = vsel %vm534, 1, 0
          %v567 = vsel %vm535, 1, 0
          %v568 = vsel %vm536, 1, 0
          %v569 = vsel %vm537, 1, 0
          %v570 = vsel %vm538, 1, 0
          %v571 = vsel %vm539, 1, 0
          %v572 = vsel %vm540, 1, 0
          %v573 = vsel %vm541, 1, 0
          %v574 = vsel %vm542, 1, 0
          %v575 = vsel %vm543, 1, 0
          %v576 = vcvt.s32.f32 %v544
          %v577 = vcvt.s32.f32 %v545
          %v578 = vcvt.s32.f32 %v546
          %v579 = vcvt.s32.f32 %v547
          %v580 = vcvt.s32.f32 %v548
          %v581 = vcvt.s32.f32 %v549
          %v582 = vcvt.s32.f32 %v550
          %v583 = vcvt.s32.f32 %v551
          %v584 = vcvt.s32.f32 %v552
          %v585 = vcvt.s32.f32 %v553
          %v586 = vcvt.s32.f32 %v554
          %v587 = vcvt.s32.f32 %v555
          %v588 = vcvt.s32.f32 %v556
          %v589 = vcvt.s32.f32 %v557
          %v590 = vcvt.s32.f32 %v558
          %v591 = vcvt.s32.f32 %v559
          %v592 = vcvt.s32.f32 %v560
          %v593 = vcvt.s32.f32 %v561
          %v594 = vcvt.s32.f32 %v562
          %v595 = vcvt.s32.f32 %v563
          %v596 = vcvt.s32.f32 %v564
          %v597 = vcvt.s32.f32 %v565
          %v598 = vcvt.s32.f32 %v566
          %v599 = vcvt.s32.f32 %v567
          %v600 = vcvt.s32.f32 %v568
          %v601 = vcvt.s32.f32 %v569
          %v602 = vcvt.s32.f32 %v570
          %v603 = vcvt.s32.f32 %v571
          %v604 = vcvt.s32.f32 %v572
          %v605 = vcvt.s32.f32 %v573
          %v606 = vcvt.s32.f32 %v574
          %v607 = vcvt.s32.f32 %v575
          %v608 = vpack.c.bf16 %v576, %v576
          %v609 = vpack.c.bf16 %v577, %v577
          %v610 = vpack.c.bf16 %v578, %v578
          %v611 = vpack.c.bf16 %v579, %v579
          %v612 = vpack.c.bf16 %v580, %v580
          %v613 = vpack.c.bf16 %v581, %v581
          %v614 = vpack.c.bf16 %v582, %v582
          %v615 = vpack.c.bf16 %v583, %v583
          %v616 = vpack.c.bf16 %v584, %v584
          %v617 = vpack.c.bf16 %v585, %v585
          %v618 = vpack.c.bf16 %v586, %v586
          %v619 = vpack.c.bf16 %v587, %v587
          %v620 = vpack.c.bf16 %v588, %v588
          %v621 = vpack.c.bf16 %v589, %v589
          %v622 = vpack.c.bf16 %v590, %v590
          %v623 = vpack.c.bf16 %v591, %v591
          %v624 = vpack.c.bf16 %v592, %v592
          %v625 = vpack.c.bf16 %v593, %v593
          %v626 = vpack.c.bf16 %v594, %v594
          %v627 = vpack.c.bf16 %v595, %v595
          %v628 = vpack.c.bf16 %v596, %v596
          %v629 = vpack.c.bf16 %v597, %v597
          %v630 = vpack.c.bf16 %v598, %v598
          %v631 = vpack.c.bf16 %v599, %v599
          %v632 = vpack.c.bf16 %v600, %v600
          %v633 = vpack.c.bf16 %v601, %v601
          %v634 = vpack.c.bf16 %v602, %v602
          %v635 = vpack.c.bf16 %v603, %v603
          %v636 = vpack.c.bf16 %v604, %v604
          %v637 = vpack.c.bf16 %v605, %v605
          %v638 = vpack.c.bf16 %v606, %v606
          %v639 = vpack.c.bf16 %v607, %v607
          %vm640 = vcmask 519168
          %641 = vst.msk [vmem:[#allocation3] sm:$0xf] %vm640, %v608
          %642 = vst.msk [vmem:[#allocation3 + $0x4] sm:$0xf] %vm640, %v609
          %643 = vst.msk [vmem:[#allocation3 + $0x8] sm:$0xf] %vm640, %v610
          %644 = vst.msk [vmem:[#allocation3 + $0xc] sm:$0xf] %vm640, %v611
          %645 = vst.msk [vmem:[#allocation3 + $0x10] sm:$0xf] %vm640, %v612
          %646 = vst.msk [vmem:[#allocation3 + $0x14] sm:$0xf] %vm640, %v613
          %647 = vst.msk [vmem:[#allocation3 + $0x18] sm:$0xf] %vm640, %v614
          %648 = vst.msk [vmem:[#allocation3 + $0x1c] sm:$0xf] %vm640, %v615
          %649 = vst.msk [vmem:[#allocation3 + $0x20] sm:$0xf] %vm640, %v616
          %650 = vst.msk [vmem:[#allocation3 + $0x24] sm:$0xf] %vm640, %v617
          %651 = vst.msk [vmem:[#allocation3 + $0x28] sm:$0xf] %vm640, %v618
          %652 = vst.msk [vmem:[#allocation3 + $0x2c] sm:$0xf] %vm640, %v619
          %653 = vst.msk [vmem:[#allocation3 + $0x30] sm:$0xf] %vm640, %v620
          %654 = vst.msk [vmem:[#allocation3 + $0x34] sm:$0xf] %vm640, %v621
          %655 = vst.msk [vmem:[#allocation3 + $0x38] sm:$0xf] %vm640, %v622
          %656 = vst.msk [vmem:[#allocation3 + $0x3c] sm:$0xf] %vm640, %v623
          %657 = vst.msk [vmem:[#allocation3 + $0x40] sm:$0xf] %vm640, %v624
          %658 = vst.msk [vmem:[#allocation3 + $0x44] sm:$0xf] %vm640, %v625
          %659 = vst.msk [vmem:[#allocation3 + $0x48] sm:$0xf] %vm640, %v626
          %660 = vst.msk [vmem:[#allocation3 + $0x4c] sm:$0xf] %vm640, %v627
          %661 = vst.msk [vmem:[#allocation3 + $0x50] sm:$0xf] %vm640, %v628
          %662 = vst.msk [vmem:[#allocation3 + $0x54] sm:$0xf] %vm640, %v629
          %663 = vst.msk [vmem:[#allocation3 + $0x58] sm:$0xf] %vm640, %v630
          %664 = vst.msk [vmem:[#allocation3 + $0x5c] sm:$0xf] %vm640, %v631
          %665 = vst.msk [vmem:[#allocation3 + $0x60] sm:$0xf] %vm640, %v632
          %666 = vst.msk [vmem:[#allocation3 + $0x64] sm:$0xf] %vm640, %v633
          %667 = vst.msk [vmem:[#allocation3 + $0x68] sm:$0xf] %vm640, %v634
          %668 = vst.msk [vmem:[#allocation3 + $0x6c] sm:$0xf] %vm640, %v635
          %669 = vst.msk [vmem:[#allocation3 + $0x70] sm:$0xf] %vm640, %v636
          %670 = vst.msk [vmem:[#allocation3 + $0x74] sm:$0xf] %vm640, %v637
          %671 = vst.msk [vmem:[#allocation3 + $0x78] sm:$0xf] %vm640, %v638
          %672 = vst.msk [vmem:[#allocation3 + $0x7c] sm:$0xf] %vm640, %v639
          %v673 = vlaneseq
          %v674 = vshrl.u32 %v673, 7
          %v675 = vadd.s32 %v674, 8
          %v676 = vadd.s32 %v674, 16
          %v677 = vadd.s32 %v674, 24
          %v678 = vadd.s32 %v674, 32
          %v679 = vadd.s32 %v674, 40
          %v680 = vadd.s32 %v674, 48
          %v681 = vadd.s32 %v674, 56
          %v682 = vld [vmem:[%s1] sm:$0x3]
          %v683 = vperm.slane %v682, 0
          %v684 = vperm.slane %v682, 1
          %vm685 = vcmp.eq.s32.totalorder %v674, %v683
          %vm686 = vcmp.eq.s32.totalorder %v674, %v684
          %vm687 = vcmp.eq.s32.totalorder %v675, %v683
          %vm688 = vcmp.eq.s32.totalorder %v675, %v684
          %vm689 = vcmp.eq.s32.totalorder %v676, %v683
          %vm690 = vcmp.eq.s32.totalorder %v676, %v684
          %vm691 = vcmp.eq.s32.totalorder %v677, %v683
          %vm692 = vcmp.eq.s32.totalorder %v677, %v684
          %vm693 = vcmp.eq.s32.totalorder %v678, %v683
          %vm694 = vcmp.eq.s32.totalorder %v678, %v684
          %vm695 = vcmp.eq.s32.totalorder %v679, %v683
          %vm696 = vcmp.eq.s32.totalorder %v679, %v684
          %vm697 = vcmp.eq.s32.totalorder %v680, %v683
          %vm698 = vcmp.eq.s32.totalorder %v680, %v684
          %vm699 = vcmp.eq.s32.totalorder %v681, %v683
          %vm700 = vcmp.eq.s32.totalorder %v681, %v684
          %v701 = vsel %vm685, 1, 0
          %v702 = vsel %vm686, 1, 0
          %v703 = vsel %vm687, 1, 0
          %v704 = vsel %vm688, 1, 0
          %v705 = vsel %vm689, 1, 0
          %v706 = vsel %vm690, 1, 0
          %v707 = vsel %vm691, 1, 0
          %v708 = vsel %vm692, 1, 0
          %v709 = vsel %vm693, 1, 0
          %v710 = vsel %vm694, 1, 0
          %v711 = vsel %vm695, 1, 0
          %v712 = vsel %vm696, 1, 0
          %v713 = vsel %vm697, 1, 0
          %v714 = vsel %vm698, 1, 0
          %v715 = vsel %vm699, 1, 0
          %v716 = vsel %vm700, 1, 0
          %v717 = vcvt.s32.f32 %v701
          %v718 = vcvt.s32.f32 %v702
          %v719 = vcvt.s32.f32 %v703
          %v720 = vcvt.s32.f32 %v704
          %v721 = vcvt.s32.f32 %v705
          %v722 = vcvt.s32.f32 %v706
          %v723 = vcvt.s32.f32 %v707
          %v724 = vcvt.s32.f32 %v708
          %v725 = vcvt.s32.f32 %v709
          %v726 = vcvt.s32.f32 %v710
          %v727 = vcvt.s32.f32 %v711
          %v728 = vcvt.s32.f32 %v712
          %v729 = vcvt.s32.f32 %v713
          %v730 = vcvt.s32.f32 %v714
          %v731 = vcvt.s32.f32 %v715
          %v732 = vcvt.s32.f32 %v716
          %v733 = vpack.c.bf16 %v718, %v717
          %v734 = vpack.c.bf16 %v720, %v719
          %v735 = vpack.c.bf16 %v722, %v721
          %v736 = vpack.c.bf16 %v724, %v723
          %v737 = vpack.c.bf16 %v726, %v725
          %v738 = vpack.c.bf16 %v728, %v727
          %v739 = vpack.c.bf16 %v730, %v729
          %v740 = vpack.c.bf16 %v732, %v731
          %741 = vst [vmem:[#allocation4] sm:$0xff] %v733
          %742 = vst [vmem:[#allocation4 + $0x8] sm:$0xff] %v734
          %743 = vst [vmem:[#allocation4 + $0x10] sm:$0xff] %v735
          %744 = vst [vmem:[#allocation4 + $0x18] sm:$0xff] %v736
          %745 = vst [vmem:[#allocation4 + $0x20] sm:$0xff] %v737
          %746 = vst [vmem:[#allocation4 + $0x28] sm:$0xff] %v738
          %747 = vst [vmem:[#allocation4 + $0x30] sm:$0xff] %v739
          %748 = vst [vmem:[#allocation4 + $0x38] sm:$0xff] %v740
        $region60: #{tpu_custom_call.1} parent=47 // pred_fallthru
          _
        %v749 = vld [vmem:[#allocation2] sm:$0xff]
        %v750 = vld [vmem:[#allocation2 + $0x8] sm:$0xff]
        %v751 = vld [vmem:[#allocation2 + $0x10] sm:$0xff]
        %v752 = vld [vmem:[#allocation2 + $0x18] sm:$0xff]
        %v753 = vld [vmem:[#allocation2 + $0x20] sm:$0xff]
        %v754 = vld [vmem:[#allocation2 + $0x28] sm:$0xff]
        %v755 = vld [vmem:[#allocation2 + $0x30] sm:$0xff]
        %v756 = vld [vmem:[#allocation2 + $0x38] sm:$0xff]
        %v757 = vpack.c.bf16 %v750, %v749
        %v758 = vpack.c.bf16 %v752, %v751
        %v759 = vpack.c.bf16 %v754, %v753
        %v760 = vpack.c.bf16 %v756, %v755
        %v761 = vld [vmem:[#allocation3] sm:$0xf]
        %v762 = vld [vmem:[#allocation3 + $0x4] sm:$0xf]
        %v763 = vld [vmem:[#allocation3 + $0x8] sm:$0xf]
        %v764 = vld [vmem:[#allocation3 + $0xc] sm:$0xf]
        %v765 = vld [vmem:[#allocation3 + $0x10] sm:$0xf]
        %v766 = vld [vmem:[#allocation3 + $0x14] sm:$0xf]
        %v767 = vld [vmem:[#allocation3 + $0x18] sm:$0xf]
        %v768 = vld [vmem:[#allocation3 + $0x1c] sm:$0xf]
        %v769 = vld [vmem:[#allocation3 + $0x20] sm:$0xf]
        %v770 = vld [vmem:[#allocation3 + $0x24] sm:$0xf]
        %v771 = vld [vmem:[#allocation3 + $0x28] sm:$0xf]
        %v772 = vld [vmem:[#allocation3 + $0x2c] sm:$0xf]
        %v773 = vld [vmem:[#allocation3 + $0x30] sm:$0xf]
        %v774 = vld [vmem:[#allocation3 + $0x34] sm:$0xf]
        %v775 = vld [vmem:[#allocation3 + $0x38] sm:$0xf]
        %v776 = vld [vmem:[#allocation3 + $0x3c] sm:$0xf]
        %v777 = vld [vmem:[#allocation3 + $0x40] sm:$0xf]
        %v778 = vld [vmem:[#allocation3 + $0x44] sm:$0xf]
        %v779 = vld [vmem:[#allocation3 + $0x48] sm:$0xf]
        %v780 = vld [vmem:[#allocation3 + $0x4c] sm:$0xf]
        %v781 = vld [vmem:[#allocation3 + $0x50] sm:$0xf]
        %v782 = vld [vmem:[#allocation3 + $0x54] sm:$0xf]
        %v783 = vld [vmem:[#allocation3 + $0x58] sm:$0xf]
        %v784 = vld [vmem:[#allocation3 + $0x5c] sm:$0xf]
        %v785 = vld [vmem:[#allocation3 + $0x60] sm:$0xf]
        %v786 = vld [vmem:[#allocation3 + $0x64] sm:$0xf]
        %v787 = vld [vmem:[#allocation3 + $0x68] sm:$0xf]
        %v788 = vld [vmem:[#allocation3 + $0x6c] sm:$0xf]
        %v789 = vld [vmem:[#allocation3 + $0x70] sm:$0xf]
        %v790 = vld [vmem:[#allocation3 + $0x74] sm:$0xf]
        %v791 = vld [vmem:[#allocation3 + $0x78] sm:$0xf]
        %v792 = vld [vmem:[#allocation3 + $0x7c] sm:$0xf]
        %v793 = vld [vmem:[%s3] sm:$0xf]
        %v794 = vld [vmem:[%s3 + $0x4] sm:$0xf]
        %v795 = vld [vmem:[%s3 + $0x8] sm:$0xf]
        %v796 = vld [vmem:[%s3 + $0xc] sm:$0xf]
        %v797 = vld [vmem:[%s3 + $0x10] sm:$0xf]
        %v798 = vld [vmem:[%s3 + $0x14] sm:$0xf]
        %v799 = vld [vmem:[%s3 + $0x18] sm:$0xf]
        %v800 = vld [vmem:[%s3 + $0x1c] sm:$0xf]
        %v801 = vld [vmem:[%s3 + $0x20] sm:$0xf]
        %v802 = vld [vmem:[%s3 + $0x24] sm:$0xf]
        %v803 = vld [vmem:[%s3 + $0x28] sm:$0xf]
        %v804 = vld [vmem:[%s3 + $0x2c] sm:$0xf]
        %v805 = vld [vmem:[%s3 + $0x30] sm:$0xf]
        %v806 = vld [vmem:[%s3 + $0x34] sm:$0xf]
        %v807 = vld [vmem:[%s3 + $0x38] sm:$0xf]
        %v808 = vld [vmem:[%s3 + $0x3c] sm:$0xf]
        %v809 = vld [vmem:[%s3 + $0x40] sm:$0xf]
        %v810 = vld [vmem:[%s3 + $0x44] sm:$0xf]
        %v811 = vld [vmem:[%s3 + $0x48] sm:$0xf]
        %v812 = vld [vmem:[%s3 + $0x4c] sm:$0xf]
        %v813 = vld [vmem:[%s3 + $0x50] sm:$0xf]
        %v814 = vld [vmem:[%s3 + $0x54] sm:$0xf]
        %v815 = vld [vmem:[%s3 + $0x58] sm:$0xf]
        %v816 = vld [vmem:[%s3 + $0x5c] sm:$0xf]
        %v817 = vld [vmem:[%s3 + $0x60] sm:$0xf]
        %v818 = vld [vmem:[%s3 + $0x64] sm:$0xf]
        %v819 = vld [vmem:[%s3 + $0x68] sm:$0xf]
        %v820 = vld [vmem:[%s3 + $0x6c] sm:$0xf]
        %v821 = vld [vmem:[%s3 + $0x70] sm:$0xf]
        %v822 = vld [vmem:[%s3 + $0x74] sm:$0xf]
        %v823 = vld [vmem:[%s3 + $0x78] sm:$0xf]
        %v824 = vld [vmem:[%s3 + $0x7c] sm:$0xf]
        %v825 = vunpack.c.l.bf16 %v793
        %v826 = vunpack.c.l.bf16 %v794
        %v827 = vunpack.c.l.bf16 %v795
        %v828 = vunpack.c.l.bf16 %v796
        %v829 = vunpack.c.l.bf16 %v797
        %v830 = vunpack.c.l.bf16 %v798
        %v831 = vunpack.c.l.bf16 %v799
        %v832 = vunpack.c.l.bf16 %v800
        %v833 = vunpack.c.l.bf16 %v801
        %v834 = vunpack.c.l.bf16 %v802
        %v835 = vunpack.c.l.bf16 %v803
        %v836 = vunpack.c.l.bf16 %v804
        %v837 = vunpack.c.l.bf16 %v805
        %v838 = vunpack.c.l.bf16 %v806
        %v839 = vunpack.c.l.bf16 %v807
        %v840 = vunpack.c.l.bf16 %v808
        %v841 = vunpack.c.l.bf16 %v809
        %v842 = vunpack.c.l.bf16 %v810
        %v843 = vunpack.c.l.bf16 %v811
        %v844 = vunpack.c.l.bf16 %v812
        %v845 = vunpack.c.l.bf16 %v813
        %v846 = vunpack.c.l.bf16 %v814
        %v847 = vunpack.c.l.bf16 %v815
        %v848 = vunpack.c.l.bf16 %v816
        %v849 = vunpack.c.l.bf16 %v817
        %v850 = vunpack.c.l.bf16 %v818
        %v851 = vunpack.c.l.bf16 %v819
        %v852 = vunpack.c.l.bf16 %v820
        %v853 = vunpack.c.l.bf16 %v821
        %v854 = vunpack.c.l.bf16 %v822
        %v855 = vunpack.c.l.bf16 %v823
        %v856 = vunpack.c.l.bf16 %v824
        %v889 = vunpack.c.l.b16 %v761
        %v890 = vunpack.c.l.b16 %v762
        %v891 = vunpack.c.l.b16 %v763
        %v892 = vunpack.c.l.b16 %v764
        %v893 = vunpack.c.l.b16 %v765
        %v894 = vunpack.c.l.b16 %v766
        %v895 = vunpack.c.l.b16 %v767
        %v896 = vunpack.c.l.b16 %v768
        %v897 = vunpack.c.l.b16 %v769
        %v898 = vunpack.c.l.b16 %v770
        %v899 = vunpack.c.l.b16 %v771
        %v900 = vunpack.c.l.b16 %v772
        %v901 = vunpack.c.l.b16 %v773
        %v902 = vunpack.c.l.b16 %v774
        %v903 = vunpack.c.l.b16 %v775
        %v904 = vunpack.c.l.b16 %v776
        %v905 = vunpack.c.l.b16 %v777
        %v906 = vunpack.c.l.b16 %v778
        %v907 = vunpack.c.l.b16 %v779
        %v908 = vunpack.c.l.b16 %v780
        %v909 = vunpack.c.l.b16 %v781
        %v910 = vunpack.c.l.b16 %v782
        %v911 = vunpack.c.l.b16 %v783
        %v912 = vunpack.c.l.b16 %v784
        %v913 = vunpack.c.l.b16 %v785
        %v914 = vunpack.c.l.b16 %v786
        %v915 = vunpack.c.l.b16 %v787
        %v916 = vunpack.c.l.b16 %v788
        %v917 = vunpack.c.l.b16 %v789
        %v918 = vunpack.c.l.b16 %v790
        %v919 = vunpack.c.l.b16 %v791
        %v920 = vunpack.c.l.b16 %v792
        %v921 = vpack.c.b16 %v890, %v889
        %v922 = vpack.c.b16 %v892, %v891
        %v923 = vpack.c.b16 %v894, %v893
        %v924 = vpack.c.b16 %v896, %v895
        %v925 = vpack.c.b16 %v898, %v897
        %v926 = vpack.c.b16 %v900, %v899
        %v927 = vpack.c.b16 %v902, %v901
        %v928 = vpack.c.b16 %v904, %v903
        %v929 = vpack.c.b16 %v906, %v905
        %v930 = vpack.c.b16 %v908, %v907
        %v931 = vpack.c.b16 %v910, %v909
        %v932 = vpack.c.b16 %v912, %v911
        %v933 = vpack.c.b16 %v914, %v913
        %v934 = vpack.c.b16 %v916, %v915
        %v935 = vpack.c.b16 %v918, %v917
        %v936 = vpack.c.b16 %v920, %v919
        %vm937 = vcmask 523264
        %v939 = vsel %vm937, %v921, 0
        %v942 = vsel %vm937, %v922, 0
        %v945 = vsel %vm937, %v923, 0
        %v948 = vsel %vm937, %v924, 0
        %v951 = vsel %vm937, %v925, 0
        %v954 = vsel %vm937, %v926, 0
        %v957 = vsel %vm937, %v927, 0
        %v960 = vsel %vm937, %v928, 0
        %v963 = vsel %vm937, %v929, 0
        %v966 = vsel %vm937, %v930, 0
        %v969 = vsel %vm937, %v931, 0
        %v972 = vsel %vm937, %v932, 0
        %v975 = vsel %vm937, %v933, 0
        %v978 = vsel %vm937, %v934, 0
        %v981 = vsel %vm937, %v935, 0
        %v984 = vsel %vm937, %v936, 0
        %986 = vmatpush.bf16.msra.mxu0 0
        %987 = vmatpush.bf16.msra.mxu0 0
        %988 = vmatpush.bf16.msra.mxu0 0
        %989 = vmatpush.bf16.msra.mxu0 0
        %990 = vmatpush.bf16.msra.mxu0 %v760
        %991 = vmatpush.bf16.msra.mxu0 %v759
        %992 = vmatpush.bf16.msra.mxu0 %v758
        %993 = vmatpush.bf16.msra.mxu0 %v757
        %994 = vmatmul.bf16.gmra.mxu0 %v939
        %v995 = vpop.f32.mrf.mxu0
        %v996 = vadd.f32 %v825, %v995
        %v997 = vpop.f32.mrf.mxu0
        %v998 = vadd.f32 %v826, %v997
        %999 = vmatmul.bf16.gmra.mxu0 %v942
        %v1000 = vpop.f32.mrf.mxu0
        %v1001 = vadd.f32 %v827, %v1000
        %v1002 = vpop.f32.mrf.mxu0
        %v1003 = vadd.f32 %v828, %v1002
        %1004 = vmatmul.bf16.gmra.mxu0 %v945
        %v1005 = vpop.f32.mrf.mxu0
        %v1006 = vadd.f32 %v829, %v1005
        %v1007 = vpop.f32.mrf.mxu0
        %v1008 = vadd.f32 %v830, %v1007
        %1009 = vmatmul.bf16.gmra.mxu0 %v948
        %v1010 = vpop.f32.mrf.mxu0
        %v1011 = vadd.f32 %v831, %v1010
        %v1012 = vpop.f32.mrf.mxu0
        %v1013 = vadd.f32 %v832, %v1012
        %1014 = vmatmul.bf16.gmra.mxu0 %v951
        %v1015 = vpop.f32.mrf.mxu0
        %v1016 = vadd.f32 %v833, %v1015
        %v1017 = vpop.f32.mrf.mxu0
        %v1018 = vadd.f32 %v834, %v1017
        %1019 = vmatmul.bf16.gmra.mxu0 %v954
        %v1020 = vpop.f32.mrf.mxu0
        %v1021 = vadd.f32 %v835, %v1020
        %v1022 = vpop.f32.mrf.mxu0
        %v1023 = vadd.f32 %v836, %v1022
        %1024 = vmatmul.bf16.gmra.mxu0 %v957
        %v1025 = vpop.f32.mrf.mxu0
        %v1026 = vadd.f32 %v837, %v1025
        %v1027 = vpop.f32.mrf.mxu0
        %v1028 = vadd.f32 %v838, %v1027
        %1029 = vmatmul.bf16.gmra.mxu0 %v960
        %v1030 = vpop.f32.mrf.mxu0
        %v1031 = vadd.f32 %v839, %v1030
        %v1032 = vpop.f32.mrf.mxu0
        %v1033 = vadd.f32 %v840, %v1032
        %1034 = vmatmul.bf16.gmra.mxu0 %v963
        %v1035 = vpop.f32.mrf.mxu0
        %v1036 = vadd.f32 %v841, %v1035
        %v1037 = vpop.f32.mrf.mxu0
        %v1038 = vadd.f32 %v842, %v1037
        %1039 = vmatmul.bf16.gmra.mxu0 %v966
        %v1040 = vpop.f32.mrf.mxu0
        %v1041 = vadd.f32 %v843, %v1040
        %v1042 = vpop.f32.mrf.mxu0
        %v1043 = vadd.f32 %v844, %v1042
        %1044 = vmatmul.bf16.gmra.mxu0 %v969
        %v1045 = vpop.f32.mrf.mxu0
        %v1046 = vadd.f32 %v845, %v1045
        %v1047 = vpop.f32.mrf.mxu0
        %v1048 = vadd.f32 %v846, %v1047
        %1049 = vmatmul.bf16.gmra.mxu0 %v972
        %v1050 = vpop.f32.mrf.mxu0
        %v1051 = vadd.f32 %v847, %v1050
        %v1052 = vpop.f32.mrf.mxu0
        %v1053 = vadd.f32 %v848, %v1052
        %1054 = vmatmul.bf16.gmra.mxu0 %v975
        %v1055 = vpop.f32.mrf.mxu0
        %v1056 = vadd.f32 %v849, %v1055
        %v1057 = vpop.f32.mrf.mxu0
        %v1058 = vadd.f32 %v850, %v1057
        %1059 = vmatmul.bf16.gmra.mxu0 %v978
        %v1060 = vpop.f32.mrf.mxu0
        %v1061 = vadd.f32 %v851, %v1060
        %v1062 = vpop.f32.mrf.mxu0
        %v1063 = vadd.f32 %v852, %v1062
        %1064 = vmatmul.bf16.gmra.mxu0 %v981
        %v1065 = vpop.f32.mrf.mxu0
        %v1066 = vadd.f32 %v853, %v1065
        %v1067 = vpop.f32.mrf.mxu0
        %v1068 = vadd.f32 %v854, %v1067
        %1069 = vmatmul.bf16.gmra.mxu0 %v984
        %v1070 = vpop.f32.mrf.mxu0
        %v1071 = vadd.f32 %v855, %v1070
        %v1072 = vpop.f32.mrf.mxu0
        %v1073 = vadd.f32 %v856, %v1072
        %1074 = vdwg.mxu0
        %v1075 = vmax.f32 %v996, 0.0
        %v1076 = vmax.f32 %v998, 0.0
        %v1077 = vmax.f32 %v1001, 0.0
        %v1078 = vmax.f32 %v1003, 0.0
        %v1079 = vmax.f32 %v1006, 0.0
        %v1080 = vmax.f32 %v1008, 0.0
        %v1081 = vmax.f32 %v1011, 0.0
        %v1082 = vmax.f32 %v1013, 0.0
        %v1083 = vmax.f32 %v1016, 0.0
        %v1084 = vmax.f32 %v1018, 0.0
        %v1085 = vmax.f32 %v1021, 0.0
        %v1086 = vmax.f32 %v1023, 0.0
        %v1087 = vmax.f32 %v1026, 0.0
        %v1088 = vmax.f32 %v1028, 0.0
        %v1089 = vmax.f32 %v1031, 0.0
        %v1090 = vmax.f32 %v1033, 0.0
        %v1091 = vmax.f32 %v1036, 0.0
        %v1092 = vmax.f32 %v1038, 0.0
        %v1093 = vmax.f32 %v1041, 0.0
        %v1094 = vmax.f32 %v1043, 0.0
        %v1095 = vmax.f32 %v1046, 0.0
        %v1096 = vmax.f32 %v1048, 0.0
        %v1097 = vmax.f32 %v1051, 0.0
        %v1098 = vmax.f32 %v1053, 0.0
        %v1099 = vmax.f32 %v1056, 0.0
        %v1100 = vmax.f32 %v1058, 0.0
        %v1101 = vmax.f32 %v1061, 0.0
        %v1102 = vmax.f32 %v1063, 0.0
        %v1103 = vmax.f32 %v1066, 0.0
        %v1104 = vmax.f32 %v1068, 0.0
        %v1105 = vmax.f32 %v1071, 0.0
        %v1106 = vmax.f32 %v1073, 0.0
        %v1107 = vpack.c.bf16 %v1075, %v1075
        %v1108 = vpack.c.bf16 %v1076, %v1076
        %v1109 = vpack.c.bf16 %v1077, %v1077
        %v1110 = vpack.c.bf16 %v1078, %v1078
        %v1111 = vpack.c.bf16 %v1079, %v1079
        %v1112 = vpack.c.bf16 %v1080, %v1080
        %v1113 = vpack.c.bf16 %v1081, %v1081
        %v1114 = vpack.c.bf16 %v1082, %v1082
        %v1115 = vpack.c.bf16 %v1083, %v1083
        %v1116 = vpack.c.bf16 %v1084, %v1084
        %v1117 = vpack.c.bf16 %v1085, %v1085
        %v1118 = vpack.c.bf16 %v1086, %v1086
        %v1119 = vpack.c.bf16 %v1087, %v1087
        %v1120 = vpack.c.bf16 %v1088, %v1088
        %v1121 = vpack.c.bf16 %v1089, %v1089
        %v1122 = vpack.c.bf16 %v1090, %v1090
        %v1123 = vpack.c.bf16 %v1091, %v1091
        %v1124 = vpack.c.bf16 %v1092, %v1092
        %v1125 = vpack.c.bf16 %v1093, %v1093
        %v1126 = vpack.c.bf16 %v1094, %v1094
        %v1127 = vpack.c.bf16 %v1095, %v1095
        %v1128 = vpack.c.bf16 %v1096, %v1096
        %v1129 = vpack.c.bf16 %v1097, %v1097
        %v1130 = vpack.c.bf16 %v1098, %v1098
        %v1131 = vpack.c.bf16 %v1099, %v1099
        %v1132 = vpack.c.bf16 %v1100, %v1100
        %v1133 = vpack.c.bf16 %v1101, %v1101
        %v1134 = vpack.c.bf16 %v1102, %v1102
        %v1135 = vpack.c.bf16 %v1103, %v1103
        %v1136 = vpack.c.bf16 %v1104, %v1104
        %v1137 = vpack.c.bf16 %v1105, %v1105
        %v1138 = vpack.c.bf16 %v1106, %v1106
        %1139 = vst [vmem:[#allocation5] sm:$0xf] %v1107
        %1140 = vst [vmem:[#allocation5 + $0x4] sm:$0xf] %v1108
        %1141 = vst [vmem:[#allocation5 + $0x8] sm:$0xf] %v1109
        %1142 = vst [vmem:[#allocation5 + $0xc] sm:$0xf] %v1110
        %1143 = vst [vmem:[#allocation5 + $0x10] sm:$0xf] %v1111
        %1144 = vst [vmem:[#allocation5 + $0x14] sm:$0xf] %v1112
        %1145 = vst [vmem:[#allocation5 + $0x18] sm:$0xf] %v1113
        %1146 = vst [vmem:[#allocation5 + $0x1c] sm:$0xf] %v1114
        %1147 = vst [vmem:[#allocation5 + $0x20] sm:$0xf] %v1115
        %1148 = vst [vmem:[#allocation5 + $0x24] sm:$0xf] %v1116
        %1149 = vst [vmem:[#allocation5 + $0x28] sm:$0xf] %v1117
        %1150 = vst [vmem:[#allocation5 + $0x2c] sm:$0xf] %v1118
        %1151 = vst [vmem:[#allocation5 + $0x30] sm:$0xf] %v1119
        %1152 = vst [vmem:[#allocation5 + $0x34] sm:$0xf] %v1120
        %1153 = vst [vmem:[#allocation5 + $0x38] sm:$0xf] %v1121
        %1154 = vst [vmem:[#allocation5 + $0x3c] sm:$0xf] %v1122
        %1155 = vst [vmem:[#allocation5 + $0x40] sm:$0xf] %v1123
        %1156 = vst [vmem:[#allocation5 + $0x44] sm:$0xf] %v1124
        %1157 = vst [vmem:[#allocation5 + $0x48] sm:$0xf] %v1125
        %1158 = vst [vmem:[#allocation5 + $0x4c] sm:$0xf] %v1126
        %1159 = vst [vmem:[#allocation5 + $0x50] sm:$0xf] %v1127
        %1160 = vst [vmem:[#allocation5 + $0x54] sm:$0xf] %v1128
        %1161 = vst [vmem:[#allocation5 + $0x58] sm:$0xf] %v1129
        %1162 = vst [vmem:[#allocation5 + $0x5c] sm:$0xf] %v1130
        %1163 = vst [vmem:[#allocation5 + $0x60] sm:$0xf] %v1131
        %1164 = vst [vmem:[#allocation5 + $0x64] sm:$0xf] %v1132
        %1165 = vst [vmem:[#allocation5 + $0x68] sm:$0xf] %v1133
        %1166 = vst [vmem:[#allocation5 + $0x6c] sm:$0xf] %v1134
        %1167 = vst [vmem:[#allocation5 + $0x70] sm:$0xf] %v1135
        %1168 = vst [vmem:[#allocation5 + $0x74] sm:$0xf] %v1136
        %1169 = vst [vmem:[#allocation5 + $0x78] sm:$0xf] %v1137
        %1170 = vst [vmem:[#allocation5 + $0x7c] sm:$0xf] %v1138
        %v1171 = vld [vmem:[#allocation4] sm:$0xff]
        %v1172 = vld [vmem:[#allocation4 + $0x8] sm:$0xff]
        %v1173 = vld [vmem:[#allocation4 + $0x10] sm:$0xff]
        %v1174 = vld [vmem:[#allocation4 + $0x18] sm:$0xff]
        %v1175 = vld [vmem:[#allocation4 + $0x20] sm:$0xff]
        %v1176 = vld [vmem:[#allocation4 + $0x28] sm:$0xff]
        %v1177 = vld [vmem:[#allocation4 + $0x30] sm:$0xff]
        %v1178 = vld [vmem:[#allocation4 + $0x38] sm:$0xff]
        %v1179 = vld [vmem:[#allocation5] sm:$0xf]
        %v1180 = vld [vmem:[#allocation5 + $0x4] sm:$0xf]
        %v1181 = vld [vmem:[#allocation5 + $0x8] sm:$0xf]
        %v1182 = vld [vmem:[#allocation5 + $0xc] sm:$0xf]
        %v1183 = vld [vmem:[#allocation5 + $0x10] sm:$0xf]
        %v1184 = vld [vmem:[#allocation5 + $0x14] sm:$0xf]
        %v1185 = vld [vmem:[#allocation5 + $0x18] sm:$0xf]
        %v1186 = vld [vmem:[#allocation5 + $0x1c] sm:$0xf]
        %v1187 = vld [vmem:[#allocation5 + $0x20] sm:$0xf]
        %v1188 = vld [vmem:[#allocation5 + $0x24] sm:$0xf]
        %v1189 = vld [vmem:[#allocation5 + $0x28] sm:$0xf]
        %v1190 = vld [vmem:[#allocation5 + $0x2c] sm:$0xf]
        %v1191 = vld [vmem:[#allocation5 + $0x30] sm:$0xf]
        %v1192 = vld [vmem:[#allocation5 + $0x34] sm:$0xf]
        %v1193 = vld [vmem:[#allocation5 + $0x38] sm:$0xf]
        %v1194 = vld [vmem:[#allocation5 + $0x3c] sm:$0xf]
        %v1195 = vld [vmem:[#allocation5 + $0x40] sm:$0xf]
        %v1196 = vld [vmem:[#allocation5 + $0x44] sm:$0xf]
        %v1197 = vld [vmem:[#allocation5 + $0x48] sm:$0xf]
        %v1198 = vld [vmem:[#allocation5 + $0x4c] sm:$0xf]
        %v1199 = vld [vmem:[#allocation5 + $0x50] sm:$0xf]
        %v1200 = vld [vmem:[#allocation5 + $0x54] sm:$0xf]
        %v1201 = vld [vmem:[#allocation5 + $0x58] sm:$0xf]
        %v1202 = vld [vmem:[#allocation5 + $0x5c] sm:$0xf]
        %v1203 = vld [vmem:[#allocation5 + $0x60] sm:$0xf]
        %v1204 = vld [vmem:[#allocation5 + $0x64] sm:$0xf]
        %v1205 = vld [vmem:[#allocation5 + $0x68] sm:$0xf]
        %v1206 = vld [vmem:[#allocation5 + $0x6c] sm:$0xf]
        %v1207 = vld [vmem:[#allocation5 + $0x70] sm:$0xf]
        %v1208 = vld [vmem:[#allocation5 + $0x74] sm:$0xf]
        %v1209 = vld [vmem:[#allocation5 + $0x78] sm:$0xf]
        %v1210 = vld [vmem:[#allocation5 + $0x7c] sm:$0xf]
        %v1219 = vunpack.c.l.b16 %v1171
        %v1220 = vunpack.c.h.b16 %v1171
        %v1221 = vunpack.c.l.b16 %v1172
        %v1222 = vunpack.c.h.b16 %v1172
        %v1223 = vunpack.c.l.b16 %v1173
        %v1224 = vunpack.c.h.b16 %v1173
        %v1225 = vunpack.c.l.b16 %v1174
        %v1226 = vunpack.c.h.b16 %v1174
        %v1227 = vunpack.c.l.b16 %v1175
        %v1228 = vunpack.c.h.b16 %v1175
        %v1229 = vunpack.c.l.b16 %v1176
        %v1230 = vunpack.c.h.b16 %v1176
        %v1231 = vunpack.c.l.b16 %v1177
        %v1232 = vunpack.c.h.b16 %v1177
        %v1233 = vunpack.c.l.b16 %v1178
        %v1234 = vunpack.c.h.b16 %v1178
        %v1235 = vpack.c.b16 %v1221, %v1219
        %v1236 = vpack.c.b16 %v1222, %v1220
        %v1237 = vpack.c.b16 %v1225, %v1223
        %v1238 = vpack.c.b16 %v1226, %v1224
        %v1239 = vpack.c.b16 %v1229, %v1227
        %v1240 = vpack.c.b16 %v1230, %v1228
        %v1241 = vpack.c.b16 %v1233, %v1231
        %v1242 = vpack.c.b16 %v1234, %v1232
        %v1283 = vunpack.c.l.b16 %v1179
        %v1284 = vunpack.c.l.b16 %v1180
        %v1285 = vunpack.c.l.b16 %v1181
        %v1286 = vunpack.c.l.b16 %v1182
        %v1287 = vunpack.c.l.b16 %v1183
        %v1288 = vunpack.c.l.b16 %v1184
        %v1289 = vunpack.c.l.b16 %v1185
        %v1290 = vunpack.c.l.b16 %v1186
        %v1291 = vunpack.c.l.b16 %v1187
        %v1292 = vunpack.c.l.b16 %v1188
        %v1293 = vunpack.c.l.b16 %v1189
        %v1294 = vunpack.c.l.b16 %v1190
        %v1295 = vunpack.c.l.b16 %v1191
        %v1296 = vunpack.c.l.b16 %v1192
        %v1297 = vunpack.c.l.b16 %v1193
        %v1298 = vunpack.c.l.b16 %v1194
        %v1299 = vunpack.c.l.b16 %v1195
        %v1300 = vunpack.c.l.b16 %v1196
        %v1301 = vunpack.c.l.b16 %v1197
        %v1302 = vunpack.c.l.b16 %v1198
        %v1303 = vunpack.c.l.b16 %v1199
        %v1304 = vunpack.c.l.b16 %v1200
        %v1305 = vunpack.c.l.b16 %v1201
        %v1306 = vunpack.c.l.b16 %v1202
        %v1307 = vunpack.c.l.b16 %v1203
        %v1308 = vunpack.c.l.b16 %v1204
        %v1309 = vunpack.c.l.b16 %v1205
        %v1310 = vunpack.c.l.b16 %v1206
        %v1311 = vunpack.c.l.b16 %v1207
        %v1312 = vunpack.c.l.b16 %v1208
        %v1313 = vunpack.c.l.b16 %v1209
        %v1314 = vunpack.c.l.b16 %v1210
        %v1315 = vpack.c.b16 %v1284, %v1283
        %v1316 = vpack.c.b16 %v1286, %v1285
        %v1317 = vpack.c.b16 %v1288, %v1287
        %v1318 = vpack.c.b16 %v1290, %v1289
        %v1319 = vpack.c.b16 %v1292, %v1291
        %v1320 = vpack.c.b16 %v1294, %v1293
        %v1321 = vpack.c.b16 %v1296, %v1295
        %v1322 = vpack.c.b16 %v1298, %v1297
        %v1323 = vpack.c.b16 %v1300, %v1299
        %v1324 = vpack.c.b16 %v1302, %v1301
        %v1325 = vpack.c.b16 %v1304, %v1303
        %v1326 = vpack.c.b16 %v1306, %v1305
        %v1327 = vpack.c.b16 %v1308, %v1307
        %v1328 = vpack.c.b16 %v1310, %v1309
        %v1329 = vpack.c.b16 %v1312, %v1311
        %v1330 = vpack.c.b16 %v1314, %v1313
        %1347 = vmatpush.bf16.msra.mxu0 %v1322
        %1348 = vmatpush.bf16.msra.mxu0 %v1321
        %1349 = vmatpush.bf16.msra.mxu0 %v1320
        %1350 = vmatpush.bf16.msra.mxu0 %v1319
        %1351 = vmatpush.bf16.msra.mxu0 %v1318
        %1352 = vmatpush.bf16.msra.mxu0 %v1317
        %1353 = vmatpush.bf16.msra.mxu0 %v1316
        %1354 = vmatpush.bf16.msra.mxu0 %v1315
        %1355 = vmatmul.bf16.gmra.mxu0 %v1235
        %v1356 = vpop.f32.mrf.mxu0
        %v1357 = vadd.f32 0.0, %v1356
        %v1358 = vpop.f32.mrf.mxu0
        %v1359 = vadd.f32 0.0, %v1358
        %1360 = vmatmul.bf16.gmra.mxu0 %v1237
        %v1361 = vpop.f32.mrf.mxu0
        %v1362 = vadd.f32 0.0, %v1361
        %v1363 = vpop.f32.mrf.mxu0
        %v1364 = vadd.f32 0.0, %v1363
        %1365 = vmatmul.bf16.gmra.mxu0 %v1239
        %v1366 = vpop.f32.mrf.mxu0
        %v1367 = vadd.f32 0.0, %v1366
        %v1368 = vpop.f32.mrf.mxu0
        %v1369 = vadd.f32 0.0, %v1368
        %1370 = vmatmul.bf16.gmra.mxu0 %v1241
        %v1371 = vpop.f32.mrf.mxu0
        %v1372 = vadd.f32 0.0, %v1371
        %v1373 = vpop.f32.mrf.mxu0
        %v1374 = vadd.f32 0.0, %v1373
        %1375 = vdwg.mxu0
        %1376 = vmatpush.bf16.msra.mxu0 %v1330
        %1377 = vmatpush.bf16.msra.mxu0 %v1329
        %1378 = vmatpush.bf16.msra.mxu0 %v1328
        %1379 = vmatpush.bf16.msra.mxu0 %v1327
        %1380 = vmatpush.bf16.msra.mxu0 %v1326
        %1381 = vmatpush.bf16.msra.mxu0 %v1325
        %1382 = vmatpush.bf16.msra.mxu0 %v1324
        %1383 = vmatpush.bf16.msra.mxu0 %v1323
        %1384 = vmatmul.bf16.gmra.mxu0 %v1236
        %v1385 = vpop.f32.mrf.mxu0
        %v1386 = vadd.f32 %v1357, %v1385
        %v1387 = vpop.f32.mrf.mxu0
        %v1388 = vadd.f32 %v1359, %v1387
        %1389 = vmatmul.bf16.gmra.mxu0 %v1238
        %v1390 = vpop.f32.mrf.mxu0
        %v1391 = vadd.f32 %v1362, %v1390
        %v1392 = vpop.f32.mrf.mxu0
        %v1393 = vadd.f32 %v1364, %v1392
        %1394 = vmatmul.bf16.gmra.mxu0 %v1240
        %v1395 = vpop.f32.mrf.mxu0
        %v1396 = vadd.f32 %v1367, %v1395
        %v1397 = vpop.f32.mrf.mxu0
        %v1398 = vadd.f32 %v1369, %v1397
        %1399 = vmatmul.bf16.gmra.mxu0 %v1242
        %v1400 = vpop.f32.mrf.mxu0
        %v1401 = vadd.f32 %v1372, %v1400
        %v1402 = vpop.f32.mrf.mxu0
        %v1403 = vadd.f32 %v1374, %v1402
        %1404 = vdwg.mxu0
        %v1405 = vadd.f32 %v749, %v1386
        %v1406 = vadd.f32 %v750, %v1388
        %v1407 = vadd.f32 %v751, %v1391
        %v1408 = vadd.f32 %v752, %v1393
        %v1409 = vadd.f32 %v753, %v1396
        %v1410 = vadd.f32 %v754, %v1398
        %v1411 = vadd.f32 %v755, %v1401
        %v1412 = vadd.f32 %v756, %v1403
        %v1413 = vld [vmem:[%s360] ss:$8 sm:$0x3]
        %s1414 = scalar_lea.vmem %s360, 1
        %v1415 = vld [vmem:[%s1414] ss:$8 sm:$0x3]
        %s1416 = scalar_lea.vmem %s360, 2
        %v1417 = vld [vmem:[%s1416] ss:$8 sm:$0x3]
        %v1418 = vld [vmem:[%s360 + $0x3] ss:$0 sm:$0xff]
        %v1419 = vld [vmem:[%s360 + $0x4] ss:$0 sm:$0xff]
        %v1420 = vld [vmem:[%s360 + $0x5] ss:$0 sm:$0xff]
        %v1421 = vpack.c.bf16 %v1406, %v1405
        %v1422 = vpack.c.bf16 %v1408, %v1407
        %v1423 = vpack.c.bf16 %v1410, %v1409
        %v1424 = vpack.c.bf16 %v1412, %v1411
        %v1425 = vld [vmem:[%s304] sm:$0xff]
        %v1426 = vld [vmem:[%s304 + $0x8] sm:$0xff]
        %v1427 = vld [vmem:[%s304 + $0x10] sm:$0xff]
        %v1428 = vld [vmem:[%s304 + $0x18] sm:$0xff]
        %v1429 = vld [vmem:[%s304 + $0x20] sm:$0xff]
        %v1430 = vld [vmem:[%s304 + $0x28] sm:$0xff]
        %v1431 = vld [vmem:[%s304 + $0x30] sm:$0xff]
        %v1432 = vld [vmem:[%s304 + $0x38] sm:$0xff]
        %v1433 = vld [vmem:[%s304 + $0x40] sm:$0xff]
        %v1434 = vld [vmem:[%s304 + $0x48] sm:$0xff]
        %v1435 = vld [vmem:[%s304 + $0x50] sm:$0xff]
        %v1436 = vld [vmem:[%s304 + $0x58] sm:$0xff]
        %v1437 = vld [vmem:[%s304 + $0x60] sm:$0xff]
        %v1438 = vld [vmem:[%s304 + $0x68] sm:$0xff]
        %v1439 = vld [vmem:[%s304 + $0x70] sm:$0xff]
        %v1440 = vld [vmem:[%s304 + $0x78] sm:$0xff]
        %v1442 = vperm.slane %v1413, 0
        %v1443 = vperm.slane %v1413, 1
        %v1462 = vunpack.c.l.b16 %v1425
        %v1463 = vunpack.c.h.b16 %v1425
        %v1464 = vunpack.c.l.b16 %v1426
        %v1465 = vunpack.c.h.b16 %v1426
        %v1466 = vunpack.c.l.b16 %v1427
        %v1467 = vunpack.c.h.b16 %v1427
        %v1468 = vunpack.c.l.b16 %v1428
        %v1469 = vunpack.c.h.b16 %v1428
        %v1470 = vunpack.c.l.b16 %v1429
        %v1471 = vunpack.c.h.b16 %v1429
        %v1472 = vunpack.c.l.b16 %v1430
        %v1473 = vunpack.c.h.b16 %v1430
        %v1474 = vunpack.c.l.b16 %v1431
        %v1475 = vunpack.c.h.b16 %v1431
        %v1476 = vunpack.c.l.b16 %v1432
        %v1477 = vunpack.c.h.b16 %v1432
        %v1478 = vunpack.c.l.b16 %v1433
        %v1479 = vunpack.c.h.b16 %v1433
        %v1480 = vunpack.c.l.b16 %v1434
        %v1481 = vunpack.c.h.b16 %v1434
        %v1482 = vunpack.c.l.b16 %v1435
        %v1483 = vunpack.c.h.b16 %v1435
        %v1484 = vunpack.c.l.b16 %v1436
        %v1485 = vunpack.c.h.b16 %v1436
        %v1486 = vunpack.c.l.b16 %v1437
        %v1487 = vunpack.c.h.b16 %v1437
        %v1488 = vunpack.c.l.b16 %v1438
        %v1489 = vunpack.c.h.b16 %v1438
        %v1490 = vunpack.c.l.b16 %v1439
        %v1491 = vunpack.c.h.b16 %v1439
        %v1492 = vunpack.c.l.b16 %v1440
        %v1493 = vunpack.c.h.b16 %v1440
        %v1494 = vpack.c.b16 %v1464, %v1462
        %v1495 = vpack.c.b16 %v1465, %v1463
        %v1496 = vpack.c.b16 %v1468, %v1466
        %v1497 = vpack.c.b16 %v1469, %v1467
        %v1498 = vpack.c.b16 %v1472, %v1470
        %v1499 = vpack.c.b16 %v1473, %v1471
        %v1500 = vpack.c.b16 %v1476, %v1474
        %v1501 = vpack.c.b16 %v1477, %v1475
        %v1502 = vpack.c.b16 %v1480, %v1478
        %v1503 = vpack.c.b16 %v1481, %v1479
        %v1504 = vpack.c.b16 %v1484, %v1482
        %v1505 = vpack.c.b16 %v1485, %v1483
        %v1506 = vpack.c.b16 %v1488, %v1486
        %v1507 = vpack.c.b16 %v1489, %v1487
        %v1508 = vpack.c.b16 %v1492, %v1490
        %v1509 = vpack.c.b16 %v1493, %v1491
        %1526 = vmatpush.bf16.msra.mxu0 %v1508
        %1527 = vmatpush.bf16.msra.mxu0 %v1506
        %1528 = vmatpush.bf16.msra.mxu0 %v1504
        %1529 = vmatpush.bf16.msra.mxu0 %v1502
        %1530 = vmatpush.bf16.msra.mxu0 %v1500
        %1531 = vmatpush.bf16.msra.mxu0 %v1498
        %1532 = vmatpush.bf16.msra.mxu0 %v1496
        %1533 = vmatpush.bf16.msra.mxu0 %v1494
        %1534 = vmatmul.bf16.gmra.mxu0 %v1421
        %v1535 = vpop.f32.mrf.mxu0
        %v1536 = vadd.f32 %v1442, %v1535
        %v1537 = vpop.f32.mrf.mxu0
        %v1538 = vadd.f32 %v1442, %v1537
        %1539 = vmatmul.bf16.gmra.mxu0 %v1422
        %v1540 = vpop.f32.mrf.mxu0
        %v1541 = vadd.f32 %v1442, %v1540
        %v1542 = vpop.f32.mrf.mxu0
        %v1543 = vadd.f32 %v1442, %v1542
        %1544 = vmatmul.bf16.gmra.mxu0 %v1423
        %v1545 = vpop.f32.mrf.mxu0
        %v1546 = vadd.f32 %v1442, %v1545
        %v1547 = vpop.f32.mrf.mxu0
        %v1548 = vadd.f32 %v1442, %v1547
        %1549 = vmatmul.bf16.gmra.mxu0 %v1424
        %v1550 = vpop.f32.mrf.mxu0
        %v1551 = vadd.f32 %v1442, %v1550
        %v1552 = vpop.f32.mrf.mxu0
        %v1553 = vadd.f32 %v1442, %v1552
        %1554 = vdwg.mxu0
        %1555 = vmatpush.bf16.msra.mxu0 %v1509
        %1556 = vmatpush.bf16.msra.mxu0 %v1507
        %1557 = vmatpush.bf16.msra.mxu0 %v1505
        %1558 = vmatpush.bf16.msra.mxu0 %v1503
        %1559 = vmatpush.bf16.msra.mxu0 %v1501
        %1560 = vmatpush.bf16.msra.mxu0 %v1499
        %1561 = vmatpush.bf16.msra.mxu0 %v1497
        %1562 = vmatpush.bf16.msra.mxu0 %v1495
        %1563 = vmatmul.bf16.gmra.mxu0 %v1421
        %v1564 = vpop.f32.mrf.mxu0
        %v1565 = vadd.f32 %v1443, %v1564
        %v1566 = vpop.f32.mrf.mxu0
        %v1567 = vadd.f32 %v1443, %v1566
        %1568 = vmatmul.bf16.gmra.mxu0 %v1422
        %v1569 = vpop.f32.mrf.mxu0
        %v1570 = vadd.f32 %v1443, %v1569
        %v1571 = vpop.f32.mrf.mxu0
        %v1572 = vadd.f32 %v1443, %v1571
        %1573 = vmatmul.bf16.gmra.mxu0 %v1423
        %v1574 = vpop.f32.mrf.mxu0
        %v1575 = vadd.f32 %v1443, %v1574
        %v1576 = vpop.f32.mrf.mxu0
        %v1577 = vadd.f32 %v1443, %v1576
        %1578 = vmatmul.bf16.gmra.mxu0 %v1424
        %v1579 = vpop.f32.mrf.mxu0
        %v1580 = vadd.f32 %v1443, %v1579
        %v1581 = vpop.f32.mrf.mxu0
        %v1582 = vadd.f32 %v1443, %v1581
        %1583 = vdwg.mxu0
        %v1584 = vadd.f32 %v1536, %v1538
        %v1585 = vadd.f32 %v1584, %v1541
        %v1586 = vadd.f32 %v1585, %v1543
        %v1587 = vadd.f32 %v1586, %v1546
        %v1588 = vadd.f32 %v1587, %v1548
        %v1589 = vadd.f32 %v1588, %v1551
        %v1590 = vadd.f32 %v1589, %v1553
        %v1591 = vrot.slane %v1590, 4
        %v1592 = vadd.f32 %v1590, %v1591
        %v1593 = vrot.slane %v1592, 2
        %v1594 = vadd.f32 %v1592, %v1593
        %v1595 = vrot.slane %v1594, 1
        %v1596 = vadd.f32 %v1594, %v1595
        %v1597 = vadd.f32 %v1565, %v1567
        %v1598 = vadd.f32 %v1597, %v1570
        %v1599 = vadd.f32 %v1598, %v1572
        %v1600 = vadd.f32 %v1599, %v1575
        %v1601 = vadd.f32 %v1600, %v1577
        %v1602 = vadd.f32 %v1601, %v1580
        %v1603 = vadd.f32 %v1602, %v1582
        %v1604 = vrot.slane %v1603, 4
        %v1605 = vadd.f32 %v1603, %v1604
        %v1606 = vrot.slane %v1605, 2
        %v1607 = vadd.f32 %v1605, %v1606
        %v1608 = vrot.slane %v1607, 1
        %v1609 = vadd.f32 %v1607, %v1608
        %v1610 = vmul.f32 %v1536, %v1536
        %v1611 = vmul.f32 %v1565, %v1565
        %v1612 = vmul.f32 %v1538, %v1538
        %v1613 = vmul.f32 %v1567, %v1567
        %v1614 = vmul.f32 %v1541, %v1541
        %v1615 = vmul.f32 %v1570, %v1570
        %v1616 = vmul.f32 %v1543, %v1543
        %v1617 = vmul.f32 %v1572, %v1572
        %v1618 = vmul.f32 %v1546, %v1546
        %v1619 = vmul.f32 %v1575, %v1575
        %v1620 = vmul.f32 %v1548, %v1548
        %v1621 = vmul.f32 %v1577, %v1577
        %v1622 = vmul.f32 %v1551, %v1551
        %v1623 = vmul.f32 %v1580, %v1580
        %v1624 = vmul.f32 %v1553, %v1553
        %v1625 = vmul.f32 %v1582, %v1582
        %v1626 = vadd.f32 %v1610, %v1612
        %v1627 = vadd.f32 %v1626, %v1614
        %v1628 = vadd.f32 %v1627, %v1616
        %v1629 = vadd.f32 %v1628, %v1618
        %v1630 = vadd.f32 %v1629, %v1620
        %v1631 = vadd.f32 %v1630, %v1622
        %v1632 = vadd.f32 %v1631, %v1624
        %v1633 = vrot.slane %v1632, 4
        %v1634 = vadd.f32 %v1632, %v1633
        %v1635 = vrot.slane %v1634, 2
        %v1636 = vadd.f32 %v1634, %v1635
        %v1637 = vrot.slane %v1636, 1
        %v1638 = vadd.f32 %v1636, %v1637
        %v1639 = vadd.f32 %v1611, %v1613
        %v1640 = vadd.f32 %v1639, %v1615
        %v1641 = vadd.f32 %v1640, %v1617
        %v1642 = vadd.f32 %v1641, %v1619
        %v1643 = vadd.f32 %v1642, %v1621
        %v1644 = vadd.f32 %v1643, %v1623
        %v1645 = vadd.f32 %v1644, %v1625
        %v1646 = vrot.slane %v1645, 4
        %v1647 = vadd.f32 %v1645, %v1646
        %v1648 = vrot.slane %v1647, 2
        %v1649 = vadd.f32 %v1647, %v1648
        %v1650 = vrot.slane %v1649, 1
        %v1651 = vadd.f32 %v1649, %v1650
        %v1652 = vmul.f32 %v1596, 0.015625
        %v1653 = vmul.f32 %v1609, 0.015625
        %v1654 = vmul.f32 %v1638, 0.015625
        %v1655 = vmul.f32 %v1651, 0.015625
        %v1656 = vmul.f32 %v1652, %v1652
        %v1657 = vmul.f32 %v1653, %v1653
        %v1658 = vsub.f32 %v1654, %v1656
        %v1659 = vsub.f32 %v1655, %v1657
        %v1660 = vsub.f32 %v1536, %v1652
        %v1661 = vsub.f32 %v1565, %v1653
        %v1662 = vsub.f32 %v1538, %v1652
        %v1663 = vsub.f32 %v1567, %v1653
        %v1664 = vsub.f32 %v1541, %v1652
        %v1665 = vsub.f32 %v1570, %v1653
        %v1666 = vsub.f32 %v1543, %v1652
        %v1667 = vsub.f32 %v1572, %v1653
        %v1668 = vsub.f32 %v1546, %v1652
        %v1669 = vsub.f32 %v1575, %v1653
        %v1670 = vsub.f32 %v1548, %v1652
        %v1671 = vsub.f32 %v1577, %v1653
        %v1672 = vsub.f32 %v1551, %v1652
        %v1673 = vsub.f32 %v1580, %v1653
        %v1674 = vsub.f32 %v1553, %v1652
        %v1675 = vsub.f32 %v1582, %v1653
        %v1676 = vadd.f32 %v1658, 1e-05
        %v1677 = vadd.f32 %v1659, 1e-05
        %v1678 = vrsqrt.pop %v1676
        %v1679 = vmul.f32 %v1678, %v1676
        %v1680 = vmul.f32 %v1679, %v1678
        %v1681 = vmul.f32 0.5, %v1680
        %v1682 = vsub.f32 1.5, %v1681
        %v1683 = vmul.f32 %v1678, %v1682
        %vm1684 = vweird.f32 %v1676
        %vm1685 = vweird.f32 %v1678
        %vm1686 = vmor %vm1684, %vm1685
        %v1687 = vsel %vm1686, %v1678, %v1683
        %v1688 = vrsqrt.pop %v1677
        %v1689 = vmul.f32 %v1688, %v1677
        %v1690 = vmul.f32 %v1689, %v1688
        %v1691 = vmul.f32 0.5, %v1690
        %v1692 = vsub.f32 1.5, %v1691
        %v1693 = vmul.f32 %v1688, %v1692
        %vm1694 = vweird.f32 %v1677
        %vm1695 = vweird.f32 %v1688
        %vm1696 = vmor %vm1694, %vm1695
        %v1697 = vsel %vm1696, %v1688, %v1693
        %v1698 = vmul.f32 %v1660, %v1687
        %v1699 = vmul.f32 %v1661, %v1697
        %v1700 = vmul.f32 %v1662, %v1687
        %v1701 = vmul.f32 %v1663, %v1697
        %v1702 = vmul.f32 %v1664, %v1687
        %v1703 = vmul.f32 %v1665, %v1697
        %v1704 = vmul.f32 %v1666, %v1687
        %v1705 = vmul.f32 %v1667, %v1697
        %v1706 = vmul.f32 %v1668, %v1687
        %v1707 = vmul.f32 %v1669, %v1697
        %v1708 = vmul.f32 %v1670, %v1687
        %v1709 = vmul.f32 %v1671, %v1697
        %v1710 = vmul.f32 %v1672, %v1687
        %v1711 = vmul.f32 %v1673, %v1697
        %v1712 = vmul.f32 %v1674, %v1687
        %v1713 = vmul.f32 %v1675, %v1697
        %v1715 = vperm.slane %v1415, 0
        %v1716 = vperm.slane %v1415, 1
        %v1719 = vmul.f32 %v1698, %v1715
        %v1720 = vmul.f32 %v1699, %v1716
        %v1721 = vmul.f32 %v1700, %v1715
        %v1722 = vmul.f32 %v1701, %v1716
        %v1723 = vmul.f32 %v1702, %v1715
        %v1724 = vmul.f32 %v1703, %v1716
        %v1725 = vmul.f32 %v1704, %v1715
        %v1726 = vmul.f32 %v1705, %v1716
        %v1727 = vmul.f32 %v1706, %v1715
        %v1728 = vmul.f32 %v1707, %v1716
        %v1729 = vmul.f32 %v1708, %v1715
        %v1730 = vmul.f32 %v1709, %v1716
        %v1731 = vmul.f32 %v1710, %v1715
        %v1732 = vmul.f32 %v1711, %v1716
        %v1733 = vmul.f32 %v1712, %v1715
        %v1734 = vmul.f32 %v1713, %v1716
        %v1736 = vperm.slane %v1417, 0
        %v1737 = vperm.slane %v1417, 1
        %v1740 = vadd.f32 %v1719, %v1736
        %v1741 = vadd.f32 %v1720, %v1737
        %v1742 = vadd.f32 %v1721, %v1736
        %v1743 = vadd.f32 %v1722, %v1737
        %v1744 = vadd.f32 %v1723, %v1736
        %v1745 = vadd.f32 %v1724, %v1737
        %v1746 = vadd.f32 %v1725, %v1736
        %v1747 = vadd.f32 %v1726, %v1737
        %v1748 = vadd.f32 %v1727, %v1736
        %v1749 = vadd.f32 %v1728, %v1737
        %v1750 = vadd.f32 %v1729, %v1736
        %v1751 = vadd.f32 %v1730, %v1737
        %v1752 = vadd.f32 %v1731, %v1736
        %v1753 = vadd.f32 %v1732, %v1737
        %v1754 = vadd.f32 %v1733, %v1736
        %v1755 = vadd.f32 %v1734, %v1737
        %v1756 = vmax.f32 %v1740, 0.0
        %v1757 = vmax.f32 %v1741, 0.0
        %v1758 = vmax.f32 %v1742, 0.0
        %v1759 = vmax.f32 %v1743, 0.0
        %v1760 = vmax.f32 %v1744, 0.0
        %v1761 = vmax.f32 %v1745, 0.0
        %v1762 = vmax.f32 %v1746, 0.0
        %v1763 = vmax.f32 %v1747, 0.0
        %v1764 = vmax.f32 %v1748, 0.0
        %v1765 = vmax.f32 %v1749, 0.0
        %v1766 = vmax.f32 %v1750, 0.0
        %v1767 = vmax.f32 %v1751, 0.0
        %v1768 = vmax.f32 %v1752, 0.0
        %v1769 = vmax.f32 %v1753, 0.0
        %v1770 = vmax.f32 %v1754, 0.0
        %v1771 = vmax.f32 %v1755, 0.0
        %v1772 = vpack.c.bf16 %v1758, %v1756
        %v1773 = vpack.c.bf16 %v1759, %v1757
        %v1774 = vpack.c.bf16 %v1762, %v1760
        %v1775 = vpack.c.bf16 %v1763, %v1761
        %v1776 = vpack.c.bf16 %v1766, %v1764
        %v1777 = vpack.c.bf16 %v1767, %v1765
        %v1778 = vpack.c.bf16 %v1770, %v1768
        %v1779 = vpack.c.bf16 %v1771, %v1769
        %v1780 = vld [vmem:[%s314] sm:$0xf]
        %v1781 = vld [vmem:[%s314 + $0x4] sm:$0xf]
        %v1782 = vld [vmem:[%s314 + $0x8] sm:$0xf]
        %v1783 = vld [vmem:[%s314 + $0xc] sm:$0xf]
        %v1784 = vld [vmem:[%s314 + $0x10] sm:$0xf]
        %v1785 = vld [vmem:[%s314 + $0x14] sm:$0xf]
        %v1786 = vld [vmem:[%s314 + $0x18] sm:$0xf]
        %v1787 = vld [vmem:[%s314 + $0x1c] sm:$0xf]
        %v1788 = vld [vmem:[%s314 + $0x20] sm:$0xf]
        %v1789 = vld [vmem:[%s314 + $0x24] sm:$0xf]
        %v1790 = vld [vmem:[%s314 + $0x28] sm:$0xf]
        %v1791 = vld [vmem:[%s314 + $0x2c] sm:$0xf]
        %v1792 = vld [vmem:[%s314 + $0x30] sm:$0xf]
        %v1793 = vld [vmem:[%s314 + $0x34] sm:$0xf]
        %v1794 = vld [vmem:[%s314 + $0x38] sm:$0xf]
        %v1795 = vld [vmem:[%s314 + $0x3c] sm:$0xf]
        %v1796 = vld [vmem:[%s314 + $0x40] sm:$0xf]
        %v1797 = vld [vmem:[%s314 + $0x44] sm:$0xf]
        %v1798 = vld [vmem:[%s314 + $0x48] sm:$0xf]
        %v1799 = vld [vmem:[%s314 + $0x4c] sm:$0xf]
        %v1800 = vld [vmem:[%s314 + $0x50] sm:$0xf]
        %v1801 = vld [vmem:[%s314 + $0x54] sm:$0xf]
        %v1802 = vld [vmem:[%s314 + $0x58] sm:$0xf]
        %v1803 = vld [vmem:[%s314 + $0x5c] sm:$0xf]
        %v1804 = vld [vmem:[%s314 + $0x60] sm:$0xf]
        %v1805 = vld [vmem:[%s314 + $0x64] sm:$0xf]
        %v1806 = vld [vmem:[%s314 + $0x68] sm:$0xf]
        %v1807 = vld [vmem:[%s314 + $0x6c] sm:$0xf]
        %v1808 = vld [vmem:[%s314 + $0x70] sm:$0xf]
        %v1809 = vld [vmem:[%s314 + $0x74] sm:$0xf]
        %v1810 = vld [vmem:[%s314 + $0x78] sm:$0xf]
        %v1811 = vld [vmem:[%s314 + $0x7c] sm:$0xf]
        %v1844 = vunpack.c.l.b16 %v1780
        %v1845 = vunpack.c.l.b16 %v1781
        %v1846 = vunpack.c.l.b16 %v1782
        %v1847 = vunpack.c.l.b16 %v1783
        %v1848 = vunpack.c.l.b16 %v1784
        %v1849 = vunpack.c.l.b16 %v1785
        %v1850 = vunpack.c.l.b16 %v1786
        %v1851 = vunpack.c.l.b16 %v1787
        %v1852 = vunpack.c.l.b16 %v1788
        %v1853 = vunpack.c.l.b16 %v1789
        %v1854 = vunpack.c.l.b16 %v1790
        %v1855 = vunpack.c.l.b16 %v1791
        %v1856 = vunpack.c.l.b16 %v1792
        %v1857 = vunpack.c.l.b16 %v1793
        %v1858 = vunpack.c.l.b16 %v1794
        %v1859 = vunpack.c.l.b16 %v1795
        %v1860 = vunpack.c.l.b16 %v1796
        %v1861 = vunpack.c.l.b16 %v1797
        %v1862 = vunpack.c.l.b16 %v1798
        %v1863 = vunpack.c.l.b16 %v1799
        %v1864 = vunpack.c.l.b16 %v1800
        %v1865 = vunpack.c.l.b16 %v1801
        %v1866 = vunpack.c.l.b16 %v1802
        %v1867 = vunpack.c.l.b16 %v1803
        %v1868 = vunpack.c.l.b16 %v1804
        %v1869 = vunpack.c.l.b16 %v1805
        %v1870 = vunpack.c.l.b16 %v1806
        %v1871 = vunpack.c.l.b16 %v1807
        %v1872 = vunpack.c.l.b16 %v1808
        %v1873 = vunpack.c.l.b16 %v1809
        %v1874 = vunpack.c.l.b16 %v1810
        %v1875 = vunpack.c.l.b16 %v1811
        %v1876 = vpack.c.b16 %v1845, %v1844
        %v1877 = vpack.c.b16 %v1847, %v1846
        %v1878 = vpack.c.b16 %v1849, %v1848
        %v1879 = vpack.c.b16 %v1851, %v1850
        %v1880 = vpack.c.b16 %v1853, %v1852
        %v1881 = vpack.c.b16 %v1855, %v1854
        %v1882 = vpack.c.b16 %v1857, %v1856
        %v1883 = vpack.c.b16 %v1859, %v1858
        %v1884 = vpack.c.b16 %v1861, %v1860
        %v1885 = vpack.c.b16 %v1863, %v1862
        %v1886 = vpack.c.b16 %v1865, %v1864
        %v1887 = vpack.c.b16 %v1867, %v1866
        %v1888 = vpack.c.b16 %v1869, %v1868
        %v1889 = vpack.c.b16 %v1871, %v1870
        %v1890 = vpack.c.b16 %v1873, %v1872
        %v1891 = vpack.c.b16 %v1875, %v1874
        %1908 = vmatpush.bf16.msra.mxu0 %v1883
        %1909 = vmatpush.bf16.msra.mxu0 %v1882
        %1910 = vmatpush.bf16.msra.mxu0 %v1881
        %1911 = vmatpush.bf16.msra.mxu0 %v1880
        %1912 = vmatpush.bf16.msra.mxu0 %v1879
        %1913 = vmatpush.bf16.msra.mxu0 %v1878
        %1914 = vmatpush.bf16.msra.mxu0 %v1877
        %1915 = vmatpush.bf16.msra.mxu0 %v1876
        %1916 = vmatmul.bf16.gmra.mxu0 %v1772
        %v1917 = vpop.f32.mrf.mxu0
        %v1918 = vadd.f32 %v1418, %v1917
        %v1919 = vpop.f32.mrf.mxu0
        %v1920 = vadd.f32 %v1418, %v1919
        %1921 = vmatmul.bf16.gmra.mxu0 %v1774
        %v1922 = vpop.f32.mrf.mxu0
        %v1923 = vadd.f32 %v1418, %v1922
        %v1924 = vpop.f32.mrf.mxu0
        %v1925 = vadd.f32 %v1418, %v1924
        %1926 = vmatmul.bf16.gmra.mxu0 %v1776
        %v1927 = vpop.f32.mrf.mxu0
        %v1928 = vadd.f32 %v1418, %v1927
        %v1929 = vpop.f32.mrf.mxu0
        %v1930 = vadd.f32 %v1418, %v1929
        %1931 = vmatmul.bf16.gmra.mxu0 %v1778
        %v1932 = vpop.f32.mrf.mxu0
        %v1933 = vadd.f32 %v1418, %v1932
        %v1934 = vpop.f32.mrf.mxu0
        %v1935 = vadd.f32 %v1418, %v1934
        %1936 = vdwg.mxu0
        %1937 = vmatpush.bf16.msra.mxu0 %v1891
        %1938 = vmatpush.bf16.msra.mxu0 %v1890
        %1939 = vmatpush.bf16.msra.mxu0 %v1889
        %1940 = vmatpush.bf16.msra.mxu0 %v1888
        %1941 = vmatpush.bf16.msra.mxu0 %v1887
        %1942 = vmatpush.bf16.msra.mxu0 %v1886
        %1943 = vmatpush.bf16.msra.mxu0 %v1885
        %1944 = vmatpush.bf16.msra.mxu0 %v1884
        %1945 = vmatmul.bf16.gmra.mxu0 %v1773
        %v1946 = vpop.f32.mrf.mxu0
        %v1947 = vadd.f32 %v1918, %v1946
        %v1948 = vpop.f32.mrf.mxu0
        %v1949 = vadd.f32 %v1920, %v1948
        %1950 = vmatmul.bf16.gmra.mxu0 %v1775
        %v1951 = vpop.f32.mrf.mxu0
        %v1952 = vadd.f32 %v1923, %v1951
        %v1953 = vpop.f32.mrf.mxu0
        %v1954 = vadd.f32 %v1925, %v1953
        %1955 = vmatmul.bf16.gmra.mxu0 %v1777
        %v1956 = vpop.f32.mrf.mxu0
        %v1957 = vadd.f32 %v1928, %v1956
        %v1958 = vpop.f32.mrf.mxu0
        %v1959 = vadd.f32 %v1930, %v1958
        %1960 = vmatmul.bf16.gmra.mxu0 %v1779
        %v1961 = vpop.f32.mrf.mxu0
        %v1962 = vadd.f32 %v1933, %v1961
        %v1963 = vpop.f32.mrf.mxu0
        %v1964 = vadd.f32 %v1935, %v1963
        %1965 = vdwg.mxu0
        %v1966 = vadd.f32 %v1947, %v1949
        %v1967 = vadd.f32 %v1966, %v1952
        %v1968 = vadd.f32 %v1967, %v1954
        %v1969 = vadd.f32 %v1968, %v1957
        %v1970 = vadd.f32 %v1969, %v1959
        %v1971 = vadd.f32 %v1970, %v1962
        %v1972 = vadd.f32 %v1971, %v1964
        %v1973 = vrot.slane %v1972, 4
        %v1974 = vadd.f32 %v1972, %v1973
        %v1975 = vrot.slane %v1974, 2
        %v1976 = vadd.f32 %v1974, %v1975
        %v1977 = vrot.slane %v1976, 1
        %v1978 = vadd.f32 %v1976, %v1977
        %v1979 = vmul.f32 %v1947, %v1947
        %v1980 = vmul.f32 %v1949, %v1949
        %v1981 = vmul.f32 %v1952, %v1952
        %v1982 = vmul.f32 %v1954, %v1954
        %v1983 = vmul.f32 %v1957, %v1957
        %v1984 = vmul.f32 %v1959, %v1959
        %v1985 = vmul.f32 %v1962, %v1962
        %v1986 = vmul.f32 %v1964, %v1964
        %v1987 = vadd.f32 %v1979, %v1980
        %v1988 = vadd.f32 %v1987, %v1981
        %v1989 = vadd.f32 %v1988, %v1982
        %v1990 = vadd.f32 %v1989, %v1983
        %v1991 = vadd.f32 %v1990, %v1984
        %v1992 = vadd.f32 %v1991, %v1985
        %v1993 = vadd.f32 %v1992, %v1986
        %v1994 = vrot.slane %v1993, 4
        %v1995 = vadd.f32 %v1993, %v1994
        %v1996 = vrot.slane %v1995, 2
        %v1997 = vadd.f32 %v1995, %v1996
        %v1998 = vrot.slane %v1997, 1
        %v1999 = vadd.f32 %v1997, %v1998
        %v2000 = vmul.f32 %v1978, 0.015625
        %v2001 = vmul.f32 %v1999, 0.015625
        %v2002 = vmul.f32 %v2000, %v2000
        %v2003 = vsub.f32 %v2001, %v2002
        %v2004 = vsub.f32 %v1947, %v2000
        %v2005 = vsub.f32 %v1949, %v2000
        %v2006 = vsub.f32 %v1952, %v2000
        %v2007 = vsub.f32 %v1954, %v2000
        %v2008 = vsub.f32 %v1957, %v2000
        %v2009 = vsub.f32 %v1959, %v2000
        %v2010 = vsub.f32 %v1962, %v2000
        %v2011 = vsub.f32 %v1964, %v2000
        %v2012 = vadd.f32 %v2003, 1e-05
        %v2013 = vrsqrt.pop %v2012
        %v2014 = vmul.f32 %v2013, %v2012
        %v2015 = vmul.f32 %v2014, %v2013
        %v2016 = vmul.f32 0.5, %v2015
        %v2017 = vsub.f32 1.5, %v2016
        %v2018 = vmul.f32 %v2013, %v2017
        %vm2019 = vweird.f32 %v2012
        %vm2020 = vweird.f32 %v2013
        %vm2021 = vmor %vm2019, %vm2020
        %v2022 = vsel %vm2021, %v2013, %v2018
        %v2023 = vmul.f32 %v2004, %v2022
        %v2024 = vmul.f32 %v2005, %v2022
        %v2025 = vmul.f32 %v2006, %v2022
        %v2026 = vmul.f32 %v2007, %v2022
        %v2027 = vmul.f32 %v2008, %v2022
        %v2028 = vmul.f32 %v2009, %v2022
        %v2029 = vmul.f32 %v2010, %v2022
        %v2030 = vmul.f32 %v2011, %v2022
        %v2031 = vmul.f32 %v2023, %v1419
        %v2032 = vmul.f32 %v2024, %v1419
        %v2033 = vmul.f32 %v2025, %v1419
        %v2034 = vmul.f32 %v2026, %v1419
        %v2035 = vmul.f32 %v2027, %v1419
        %v2036 = vmul.f32 %v2028, %v1419
        %v2037 = vmul.f32 %v2029, %v1419
        %v2038 = vmul.f32 %v2030, %v1419
        %v2039 = vadd.f32 %v2031, %v1420
        %v2040 = vadd.f32 %v2032, %v1420
        %v2041 = vadd.f32 %v2033, %v1420
        %v2042 = vadd.f32 %v2034, %v1420
        %v2043 = vadd.f32 %v2035, %v1420
        %v2044 = vadd.f32 %v2036, %v1420
        %v2045 = vadd.f32 %v2037, %v1420
        %v2046 = vadd.f32 %v2038, %v1420
        %p2047 = scmp.lt.s32.totalorder %s27, 2
        // Predicated region
        $region61: #{tpu_custom_call.1} parent=47 // pred_check
          %p2048 = pneg %p2047
        $region62: #{tpu_custom_call.1} parent=47 // pred_check_branch
          %2050 = sbr.rel (%p2048) target = $region64
        $region63: #{tpu_custom_call.1} parent=47 // pred_region
          %v2051 = vmax.f32 %v2039, 0.0
          %v2052 = vmax.f32 %v2040, 0.0
          %v2053 = vmax.f32 %v2041, 0.0
          %v2054 = vmax.f32 %v2042, 0.0
          %v2055 = vmax.f32 %v2043, 0.0
          %v2056 = vmax.f32 %v2044, 0.0
          %v2057 = vmax.f32 %v2045, 0.0
          %v2058 = vmax.f32 %v2046, 0.0
          %2059 = vst [vmem:[%s355] sm:$0xff] %v2051
          %2060 = vst [vmem:[%s355 + $0x8] sm:$0xff] %v2052
          %2061 = vst [vmem:[%s355 + $0x10] sm:$0xff] %v2053
          %2062 = vst [vmem:[%s355 + $0x18] sm:$0xff] %v2054
          %2063 = vst [vmem:[%s355 + $0x20] sm:$0xff] %v2055
          %2064 = vst [vmem:[%s355 + $0x28] sm:$0xff] %v2056
          %2065 = vst [vmem:[%s355 + $0x30] sm:$0xff] %v2057
          %2066 = vst [vmem:[%s355 + $0x38] sm:$0xff] %v2058
          %2067 = vst [vmem:[#allocation2] sm:$0xff] %v2051
          %2068 = vst [vmem:[#allocation2 + $0x8] sm:$0xff] %v2052
          %2069 = vst [vmem:[#allocation2 + $0x10] sm:$0xff] %v2053
          %2070 = vst [vmem:[#allocation2 + $0x18] sm:$0xff] %v2054
          %2071 = vst [vmem:[#allocation2 + $0x20] sm:$0xff] %v2055
          %2072 = vst [vmem:[#allocation2 + $0x28] sm:$0xff] %v2056
          %2073 = vst [vmem:[#allocation2 + $0x30] sm:$0xff] %v2057
          %2074 = vst [vmem:[#allocation2 + $0x38] sm:$0xff] %v2058
        $region64: #{tpu_custom_call.1} parent=47 // pred_fallthru
          _
        %p2075 = scmp.eq.s32.totalorder %s27, 2
        // Predicated region
        $region65: #{tpu_custom_call.1} parent=47 // pred_check
          %p2076 = pneg %p2075
        $region66: #{tpu_custom_call.1} parent=47 // pred_check_branch
          %2078 = sbr.rel (%p2076) target = $region68
        $region67: #{tpu_custom_call.1} parent=47 // pred_region
          %2079 = vst [vmem:[%s355] sm:$0xff] %v2039
          %2080 = vst [vmem:[%s355 + $0x8] sm:$0xff] %v2040
          %2081 = vst [vmem:[%s355 + $0x10] sm:$0xff] %v2041
          %2082 = vst [vmem:[%s355 + $0x18] sm:$0xff] %v2042
          %2083 = vst [vmem:[%s355 + $0x20] sm:$0xff] %v2043
          %2084 = vst [vmem:[%s355 + $0x28] sm:$0xff] %v2044
          %2085 = vst [vmem:[%s355 + $0x30] sm:$0xff] %v2045
          %2086 = vst [vmem:[%s355 + $0x38] sm:$0xff] %v2046
          %2087 = vst [vmem:[#allocation2] sm:$0xff] %v2039
          %2088 = vst [vmem:[#allocation2 + $0x8] sm:$0xff] %v2040
          %2089 = vst [vmem:[#allocation2 + $0x10] sm:$0xff] %v2041
          %2090 = vst [vmem:[#allocation2 + $0x18] sm:$0xff] %v2042
          %2091 = vst [vmem:[#allocation2 + $0x20] sm:$0xff] %v2043
          %2092 = vst [vmem:[#allocation2 + $0x28] sm:$0xff] %v2044
          %2093 = vst [vmem:[#allocation2 + $0x30] sm:$0xff] %v2045
          %2094 = vst [vmem:[#allocation2 + $0x38] sm:$0xff] %v2046
        $region68: #{tpu_custom_call.1} parent=47 // pred_fallthru
          _
        %s2095 = sand.u32 %s197, 1
        %s2096 = scalar_lea.sflag [#allocation8], %s2095
        %s2097 = sand.u32 %s197, 1
        %s2098 = smul.addr %s2097, 64
        %s2099 = scalar_lea.vmem [#allocation11], %s2098
        // Predicated region
        $region69: #{tpu_custom_call.1} parent=47 // pred_check
          %p2100 = pneg %p207
        $region70: #{tpu_custom_call.1} parent=47 // pred_check_branch
          %2102 = sbr.rel (%p2100) target = $region72
        $region71: #{tpu_custom_call.1} parent=47 // pred_region
          %2104 = vsyncadd %s2096, 0
          %s2105 = smul.addr %s27, 8
          %s2106 = smul.addr %s2105, 8
          %s2107 = scalar_lea.hbm %s7, %s2106
          %s2108 = sshll.u32 %s2099, 4
          %s2109 = int_to_ptr.vmem [resolvable:$true] %s2108
          %s2110 = sshll.u32 %s2107, 4
          %s2111 = int_to_ptr.hbm [resolvable:$true] %s2110
          %2116 = dma.vmem_to_hbm [thread:$0]  %s2109, 1024, %s2111, %s2096, 128, 128, 8
        $region72: #{tpu_custom_call.1} parent=47 // pred_fallthru
          _
      $region48: #{tpu_custom_call.1} parent=5 // pred_fallthru
        _
      %p2117 = scmp.le.s32.totalorder 2, %s22
      // Predicated region
      $region73: #{tpu_custom_call.1} parent=5 // pred_check
        %p2118 = pneg %p2117
      $region74: #{tpu_custom_call.1} parent=5 // pred_check_branch
        %2120 = sbr.rel (%p2118) target = $region76
      $region75: #{tpu_custom_call.1} parent=5 // pred_region
        %s2121 = ssub.s32 %s22, 2
        // Predicated region
        $region77: #{tpu_custom_call.1} parent=75 // pred_check
          %p2122 = pneg %p213
        $region78: #{tpu_custom_call.1} parent=75 // pred_check_branch
          %2124 = sbr.rel (%p2122) target = $region80
        $region79: #{tpu_custom_call.1} parent=75 // pred_region
          %s2125 = sand.u32 %s198, 1
          %s2126 = scalar_lea.sflag [#allocation8], %s2125
          %s2127 = sand.u32 %s198, 1
          %s2128 = smul.addr %s2127, 64
          %s2129 = scalar_lea.vmem [#allocation11], %s2128
          %2131 = dma.done %s2126, 1024
        $region80: #{tpu_custom_call.1} parent=75 // pred_fallthru
          _
      $region76: #{tpu_custom_call.1} parent=5 // pred_fallthru
        _
    $region6: #{tpu_custom_call.1} parent=1 // loop_footer
      %s26 = sadd.s32 1, %s22
    $region7: #{tpu_custom_call.1} parent=1 // loop_footer_branch
      %21 = sbr.rel target = $region3
    $region8: #{tpu_custom_call.1} parent=1 // loop_exit
      _
    %2132 = vsyncpa [#allocation7], 1
    %s2133 = scalar_lea.sflag [#allocation7], 1
    %2134 = vsyncpa %s2133, 1
    %2135 = vsyncpa [#allocation10], 1
    %s2136 = scalar_lea.sflag [#allocation10], 1
    %2137 = vsyncpa %s2136, 1
    %2138 = vsyncpa [#allocation8], 1
    %s2139 = scalar_lea.sflag [#allocation8], 1
    %2140 = vsyncpa %s2139, 1

</llo_original>
